<compile_context>
chip_gen: v7x
topology: tpu7x:2x2x1
jax: 0.10.0
libtpu: 0.0.40
codegen_flags: <defaults>
</compile_context>

<pallas_src>
import functools

import jax
import jax.numpy as jnp
import numpy as np
from jax import lax
from jax.experimental import pallas as pl
from jax.experimental.pallas import tpu as pltpu

BN_EPS = 1e-5

# Column layout of the packed per-channel parameter block pkc (Cout, 8):
#   0: conv1 combined bias   1: se1 fc1 bias (padded)   2: se1 fc2 bias
#   3: conv2 bias            4: se2 fc1 bias (padded)   5: se2 fc2 bias


def _vmem_limit():
    try:
        cap = pltpu.get_tpu_info().vmem_capacity_bytes
    except Exception:
        cap = 64 * 1024 * 1024
    return max(int(cap * 3 // 4), 32 * 1024 * 1024)


# --------------------------------------------------------------------------
# Kernels (grid = (B,), one image per step, all axes "parallel")
# Activations are (Cout, S): channels on sublanes, spatial on lanes.
# --------------------------------------------------------------------------
def _conv1_kernel(ta_ref, tb_ref, w1_ref, pkc_ref, conv1_ref, stats1_ref, *, s, ow):
    # folded depthwise(3x3, stride 2) + pointwise(1x1) as three NT matmuls
    # on contiguous row-windows of the two tap tensors.
    dn = (((1,), (1,)), ((), ()))                 # contract lhs dim1 with rhs dim1
    top = ta_ref[0:s, :]                          # taps for kh = 0
    bot = ta_ref[ow:ow + s, :]                    # taps for kh = 2 (shifted window)
    mid = tb_ref[...]                             # taps for kh = 1
    conv1 = (lax.dot_general(w1_ref[0], top, dn, preferred_element_type=jnp.float32)
             + lax.dot_general(w1_ref[1], mid, dn, preferred_element_type=jnp.float32)
             + lax.dot_general(w1_ref[2], bot, dn, preferred_element_type=jnp.float32)
             + pkc_ref[:, 0:1])                   # (Cout, S) f32
    conv1_ref[...] = conv1.astype(conv1_ref.dtype)          # bf16 store
    # per-image BN1 partials from the f32 accumulator (lane-reduction, XLU)
    stats1_ref[:, 0:1] = jnp.sum(conv1, axis=1, keepdims=True)
    stats1_ref[:, 1:2] = jnp.sum(conv1 * conv1, axis=1, keepdims=True)


def _mid_kernel(conv1_ref, x_ref, bn1_ref, pkc_ref, sw1_ref, sw2_ref,
                w2x_ref, w2s_ref, y_ref, stats2_ref, *, inv_s, cr):
    # BN1 (precomputed scale/shift) + ReLU
    h = jnp.maximum(conv1_ref[...].astype(jnp.float32) * bn1_ref[:, 0:1]
                    + bn1_ref[:, 1:2], 0.0)                  # (Cout, S)
    # SE1: per-image global average pool over lanes, tiny FCs on the MXU.
    pooled = (jnp.sum(h, axis=1, keepdims=True) * inv_s).astype(jnp.bfloat16)
    z = jnp.maximum(
        jnp.dot(sw1_ref[0], pooled, preferred_element_type=jnp.float32)
        + pkc_ref[0:cr, 1:2], 0.0)                           # (cr, 1)
    gate = jax.nn.sigmoid(
        jnp.dot(sw2_ref[0], z.astype(jnp.bfloat16), preferred_element_type=jnp.float32)
        + pkc_ref[:, 2:3])                                   # (Cout, 1)
    hg = (h * gate).astype(jnp.bfloat16)
    # concat([x, h]) 1x1 conv as a split matmul: W2x^T @ x + W2s^T @ h
    y = (jnp.dot(w2x_ref[...], x_ref[...].astype(jnp.bfloat16),
                 preferred_element_type=jnp.float32)
         + jnp.dot(w2s_ref[...], hg, preferred_element_type=jnp.float32)
         + pkc_ref[:, 3:4])                                  # (Cout, S) f32
    y_ref[...] = y.astype(y_ref.dtype)                       # bf16 store
    stats2_ref[:, 0:1] = jnp.sum(y, axis=1, keepdims=True)
    stats2_ref[:, 1:2] = jnp.sum(y * y, axis=1, keepdims=True)


def _out_kernel(y_ref, bn2_ref, pkc_ref, sw1_ref, sw2_ref, o_ref, *, inv_s, cr):
    h = jnp.maximum(y_ref[...].astype(jnp.float32) * bn2_ref[:, 0:1]
                    + bn2_ref[:, 1:2], 0.0)
    pooled = (jnp.sum(h, axis=1, keepdims=True) * inv_s).astype(jnp.bfloat16)
    z = jnp.maximum(
        jnp.dot(sw1_ref[1], pooled, preferred_element_type=jnp.float32)
        + pkc_ref[0:cr, 4:5], 0.0)
    gate = jax.nn.sigmoid(
        jnp.dot(sw2_ref[1], z.astype(jnp.bfloat16), preferred_element_type=jnp.float32)
        + pkc_ref[:, 5:6])
    o_ref[...] = (h * gate).astype(o_ref.dtype)              # NCHW-flat, f32


# --------------------------------------------------------------------------
# One-time (offline) weight folding / packing / transposing / bf16 casting
# --------------------------------------------------------------------------
def pack_params(params):
    w_dw = params["w_dw"]                                    # (9, Cin) taps
    w_pw = params["w_pw"]                                    # (Cin, Cout)
    cin, cout = w_pw.shape
    cr = params["se1_w1"].shape[1]

    # fold depthwise taps into the pointwise weight; group by kernel row kh,
    # transpose so the kernel does  W^T @ taps^T  without any in-kernel
    # transposes.  Rows within a kh group are ordered (kw, cin) to match the
    # tap tensors' lane layout.
    wc = (w_dw[:, :, None] * w_pw[None, :, :]).reshape(3, 3 * cin, cout)
    w1 = jnp.transpose(wc, (0, 2, 1)).astype(jnp.bfloat16)   # (3, Cout, 3*Cin)
    b1 = (params["b_pw"] + jnp.dot(params["b_dw"], w_pw,
                                   precision=jax.lax.Precision.HIGHEST))[0]

    def padc(v):                                             # (1, cr) -> (Cout,)
        return jnp.pad(v[0], (0, cout - cr))

    zeros = jnp.zeros((cout,), jnp.float32)
    pkc = jnp.stack([b1, padc(params["se1_b1"]), params["se1_b2"][0],
                     params["b2"][0], padc(params["se2_b1"]), params["se2_b2"][0],
                     zeros, zeros], axis=1).astype(jnp.float32)          # (Cout, 8)

    return dict(
        w1=w1, pkc=pkc,
        w2x_t=params["w2_x"].T.astype(jnp.bfloat16),         # (Cout, Cout)
        w2s_t=params["w2_s"].T.astype(jnp.bfloat16),         # (Cout, Cout)
        se_w1t=jnp.stack([params["se1_w1"].T,
                          params["se2_w1"].T]).astype(jnp.bfloat16),     # (2, cr, Cout)
        se_w2t=jnp.stack([params["se1_w2"].T,
                          params["se2_w2"].T]).astype(jnp.bfloat16),     # (2, Cout, cr)
        gamma1=params["gamma1"][0], beta1=params["beta1"][0],
        gamma2=params["gamma2"][0], beta2=params["beta2"][0],
    )


def _bn_affine(stats, count, gamma, beta):
    """Finish training-mode BN from per-image [sum, sumsq] partials (XLA)."""
    s = jnp.sum(stats, axis=0)                               # (Cout, 2)
    mean = s[:, 0] / count
    var = jnp.maximum(s[:, 1] / count - mean * mean, 0.0)    # biased variance
    scale = gamma * jax.lax.rsqrt(var + BN_EPS)
    shift = beta - mean * scale
    return jnp.stack([scale, shift], axis=1).astype(jnp.float32)   # (Cout, 2)


# --------------------------------------------------------------------------
# Forward wrapper (tap extraction + three pallas_calls under a single jit)
# --------------------------------------------------------------------------
@jax.jit
def side_se_conv2d(x_nchw, side_nchw, w):
    B, Cout, OH, OW = x_nchw.shape
    _, Cin, H, W = side_nchw.shape
    assert OH == (H - 1) // 2 + 1 and OW == (W - 1) // 2 + 1
    S = OH * OW
    cr = w["se_w1t"].shape[1]
    inv_s = 1.0 / float(S)
    n_total = float(B * S)

    # ---- stride-2 tap extraction (replaces 9x im2col) ----------------------
    # taps_e[b, r*OW+ow, kw*Cin+c] = side_pad[b, 2r,   kw+2ow, c]   (kh = 0, 2)
    # taps_o[b, r*OW+ow, kw*Cin+c] = side_pad[b, 2r+1, kw+2ow, c]   (kh = 1)
    side_nhwc = jnp.transpose(side_nchw, (0, 2, 3, 1))
    padded = jnp.pad(side_nhwc, ((0, 0), (1, 1), (1, 1), (0, 0)))

    def phase_taps(row_phase, nrows):
        rows = padded[:, row_phase::2][:, :nrows]            # (B, nrows, W+2, Cin)
        cols = [rows[:, :, kw:kw + 2 * OW - 1:2, :] for kw in range(3)]
        t = jnp.concatenate(cols, axis=-1)                   # (B, nrows, OW, 3*Cin)
        return t.reshape(B, nrows * OW, 3 * Cin).astype(jnp.bfloat16)

    taps_e = phase_taps(0, OH + 1)                           # (B, S+OW, 3*Cin)
    taps_o = phase_taps(1, OH)                               # (B, S,    3*Cin)

    x_cs = x_nchw.reshape(B, Cout, S)                        # NCHW stays put

    cparams = pltpu.CompilerParams(
        dimension_semantics=("parallel",),                   # both TCs on v7x
        vmem_limit_bytes=_vmem_limit())

    def img_spec(c, s):                                      # per-image (c, s) block
        return pl.BlockSpec((None, c, s), lambda b: (b, 0, 0))

    def const_spec(arr):
        nd = arr.ndim
        return pl.BlockSpec(arr.shape, lambda b: (0,) * nd)

    stats_spec = pl.BlockSpec((None, Cout, 2), lambda b: (b, 0, 0))
    stats_shape = jax.ShapeDtypeStruct((B, Cout, 2), jnp.float32)
    act_shape = jax.ShapeDtypeStruct((B, Cout, S), jnp.bfloat16)   # bf16 inter-pass

    # pass 1: folded dw+pw conv, per-image BN1 partial stats
    conv1, stats1 = pl.pallas_call(
        functools.partial(_conv1_kernel, s=S, ow=OW),
        grid=(B,),
        in_specs=[pl.BlockSpec((None, S + OW, 3 * Cin), lambda b: (b, 0, 0)),
                  pl.BlockSpec((None, S, 3 * Cin), lambda b: (b, 0, 0)),
                  const_spec(w["w1"]), const_spec(w["pkc"])],
        out_specs=(img_spec(Cout, S), stats_spec),
        out_shape=(act_shape, stats_shape),
        compiler_params=cparams,
    )(taps_e, taps_o, w["w1"], w["pkc"])

    bn1 = _bn_affine(stats1, n_total, w["gamma1"], w["beta1"])     # (Cout, 2)

    # pass 2: BN1+ReLU, SE1, split concat-1x1 conv, per-image BN2 partials
    y, stats2 = pl.pallas_call(
        functools.partial(_mid_kernel, inv_s=inv_s, cr=cr),
        grid=(B,),
        in_specs=[img_spec(Cout, S), img_spec(Cout, S), const_spec(bn1),
                  const_spec(w["pkc"]), const_spec(w["se_w1t"]),
                  const_spec(w["se_w2t"]), const_spec(w["w2x_t"]),
                  const_spec(w["w2s_t"])],
        out_specs=(img_spec(Cout, S), stats_spec),
        out_shape=(act_shape, stats_shape),
        compiler_params=cparams,
    )(conv1, x_cs, bn1, w["pkc"], w["se_w1t"], w["se_w2t"], w["w2x_t"], w["w2s_t"])

    bn2 = _bn_affine(stats2, n_total, w["gamma2"], w["beta2"])

    # pass 3: BN2+ReLU, SE2, final NCHW output (f32, module dtype)
    out = pl.pallas_call(
        functools.partial(_out_kernel, inv_s=inv_s, cr=cr),
        grid=(B,),
        in_specs=[img_spec(Cout, S), const_spec(bn2), const_spec(w["pkc"]),
                  const_spec(w["se_w1t"]), const_spec(w["se_w2t"])],
        out_specs=img_spec(Cout, S),
        out_shape=jax.ShapeDtypeStruct((B, Cout, S), jnp.float32),
        compiler_params=cparams,
    )(y, bn2, w["pkc"], w["se_w1t"], w["se_w2t"])

    return out.reshape(B, Cout, OH, OW)                      # free reshape, no relayout


# --------------------------------------------------------------------------
# Deterministic parameter init (synthetic weights; shapes match the module)
# --------------------------------------------------------------------------
def init_params(key, in_channels, out_channels, reduction=16):
    cr = out_channels // reduction
    ks = jax.random.split(key, 19)

    def rnd(k, shape, scale=0.1):
        return (scale * jax.random.normal(k, shape)).astype(jnp.float32)

    return dict(
        w_dw=rnd(ks[0], (9, in_channels), 0.3),              # depthwise 3x3 taps
        b_dw=rnd(ks[1], (1, in_channels)),
        w_pw=rnd(ks[2], (in_channels, out_channels), 0.3),   # pointwise 1x1
        b_pw=rnd(ks[3], (1, out_channels)),
        gamma1=1.0 + rnd(ks[4], (1, out_channels)),
        beta1=rnd(ks[5], (1, out_channels)),
        se1_w1=rnd(ks[6], (out_channels, cr), 0.3),
        se1_b1=rnd(ks[7], (1, cr)),
        se1_w2=rnd(ks[8], (cr, out_channels), 0.3),
        se1_b2=rnd(ks[9], (1, out_channels)),
        w2_x=rnd(ks[10], (out_channels, out_channels), 0.2),  # sideconv2, x half
        w2_s=rnd(ks[11], (out_channels, out_channels), 0.2),  # sideconv2, side half
        b2=rnd(ks[12], (1, out_channels)),
        gamma2=1.0 + rnd(ks[13], (1, out_channels)),
        beta2=rnd(ks[14], (1, out_channels)),
        se2_w1=rnd(ks[15], (out_channels, cr), 0.3),
        se2_b1=rnd(ks[16], (1, cr)),
        se2_w2=rnd(ks[17], (cr, out_channels), 0.3),
        se2_b2=rnd(ks[18], (1, out_channels)),
    )


# --------------------------------------------------------------------------
# Pure-JAX reference (high-precision lax convs) for correctness checking
# --------------------------------------------------------------------------
def reference(x_nchw, side_nchw, params):
    B, Cout, OH, OW = x_nchw.shape
    Cin = side_nchw.shape[1]
    P = jax.lax.Precision.HIGHEST

    w_dw = params["w_dw"].T.reshape(Cin, 1, 3, 3)
    dw = jax.lax.conv_general_dilated(
        side_nchw, w_dw, window_strides=(2, 2), padding=((1, 1), (1, 1)),
        feature_group_count=Cin, dimension_numbers=("NCHW", "OIHW", "NCHW"),
        precision=P)
    dw = dw + params["b_dw"].reshape(1, Cin, 1, 1)

    w_pw = params["w_pw"].T.reshape(Cout, Cin, 1, 1)
    pw = jax.lax.conv_general_dilated(
        dw, w_pw, (1, 1), "VALID",
        dimension_numbers=("NCHW", "OIHW", "NCHW"),
        precision=P) + params["b_pw"].reshape(1, Cout, 1, 1)

    def bn_relu(t, gamma, beta):
        mean = jnp.mean(t, axis=(0, 2, 3), keepdims=True)
        var = jnp.mean((t - mean) ** 2, axis=(0, 2, 3), keepdims=True)
        out = (t - mean) * jax.lax.rsqrt(var + BN_EPS) * gamma.reshape(1, -1, 1, 1) \
            + beta.reshape(1, -1, 1, 1)
        return jnp.maximum(out, 0.0)

    def se(t, wa, ba, wb, bb):
        pooled = jnp.mean(t, axis=(2, 3))
        z = jnp.maximum(jnp.dot(pooled, wa, precision=P) + ba, 0.0)
        gate = jax.nn.sigmoid(jnp.dot(z, wb, precision=P) + bb)
        return t * gate[:, :, None, None]

    h = bn_relu(pw, params["gamma1"], params["beta1"])
    h = se(h, params["se1_w1"], params["se1_b1"], params["se1_w2"], params["se1_b2"])

    cat = jnp.concatenate([x_nchw, h], axis=1)
    w2 = jnp.concatenate([params["w2_x"], params["w2_s"]], axis=0).T.reshape(Cout, 2 * Cout, 1, 1)
    y = jax.lax.conv_general_dilated(
        cat, w2, (1, 1), "VALID",
        dimension_numbers=("NCHW", "OIHW", "NCHW"),
        precision=P) + params["b2"].reshape(1, Cout, 1, 1)
    y = bn_relu(y, params["gamma2"], params["beta2"])
    y = se(y, params["se2_w1"], params["se2_b1"], params["se2_w2"], params["se2_b2"])
    return y


if __name__ == "__main__":
    key = jax.random.PRNGKey(0)
    k_side, k_x, k_par = jax.random.split(key, 3)

    B, Cin, H, W = 2, 4, 16, 16
    Cout = 32                       # must be >= reduction (16) so channels//16 >= 1
    OH = OW = (H - 1) // 2 + 1      # = 8

    side = jax.random.normal(k_side, (B, Cin, H, W), jnp.float32)
    x = jax.random.normal(k_x, (B, Cout, OH, OW), jnp.float32)
    params = init_params(k_par, Cin, Cout)
    packed = pack_params(params)    # offline fold / transpose / pack / bf16-cast

    out = jax.block_until_ready(side_se_conv2d(x, side, packed))
    ref = jax.block_until_ready(reference(x, side, params))

    assert out.shape == (B, Cout, OH, OW)
    np.testing.assert_allclose(np.asarray(out), np.asarray(ref), rtol=2e-2, atol=2e-2)
    print("KERNEL_OK")
</pallas_src>

<mosaic_0001>
module attributes {stable_mosaic.version = 11 : i64} {
  func.func @_conv1_kernel(%arg0: i32, %arg1: memref<1x72x12xbf16, #tpu.memory_space<vmem>>, %arg2: memref<1x64x12xbf16, #tpu.memory_space<vmem>>, %arg3: memref<3x32x12xbf16, #tpu.memory_space<vmem>>, %arg4: memref<32x8xf32, #tpu.memory_space<vmem>>, %arg5: memref<1x32x64xbf16, #tpu.memory_space<vmem>>, %arg6: memref<1x32x2xf32, #tpu.memory_space<vmem>>) attributes {dimension_semantics = [#tpu.dimension_semantics<parallel>], iteration_bounds = array<i64: 2>, scalar_prefetch = 0 : i64, scratch_operands = 0 : i64, tpu.core_type = #tpu.core_type<tc>, window_params = [{transform_indices = @transform_0, window_bounds = array<i64: 1, 72, 12>}, {transform_indices = @transform_1, window_bounds = array<i64: 1, 64, 12>}, {pipeline_mode = #tpu.pipeline_mode<synchronous>, transform_indices = @transform_2, window_bounds = array<i64: 3, 32, 12>}, {pipeline_mode = #tpu.pipeline_mode<synchronous>, transform_indices = @transform_3, window_bounds = array<i64: 32, 8>}, {transform_indices = @transform_4, window_bounds = array<i64: 1, 32, 64>}, {transform_indices = @transform_5, window_bounds = array<i64: 1, 32, 2>}]} {
    %c0 = arith.constant 0 : index
    %c0_0 = arith.constant 0 : index
    %c0_1 = arith.constant 0 : index
    %0 = vector.load %arg1[%c0, %c0_0, %c0_1] : memref<1x72x12xbf16, #tpu.memory_space<vmem>>, vector<1x64x12xbf16>
    %1 = vector.shape_cast %0 : vector<1x64x12xbf16> to vector<64x12xbf16>
    %c0_2 = arith.constant 0 : index
    %c8 = arith.constant 8 : index
    %c0_3 = arith.constant 0 : index
    %2 = vector.load %arg1[%c0_2, %c8, %c0_3] : memref<1x72x12xbf16, #tpu.memory_space<vmem>>, vector<1x64x12xbf16>
    %3 = vector.shape_cast %2 : vector<1x64x12xbf16> to vector<64x12xbf16>
    %c0_4 = arith.constant 0 : index
    %c0_5 = arith.constant 0 : index
    %c0_6 = arith.constant 0 : index
    %4 = vector.load %arg2[%c0_4, %c0_5, %c0_6] : memref<1x64x12xbf16, #tpu.memory_space<vmem>>, vector<1x64x12xbf16>
    %5 = vector.shape_cast %4 : vector<1x64x12xbf16> to vector<64x12xbf16>
    %c0_7 = arith.constant 0 : index
    %c0_8 = arith.constant 0 : index
    %c0_9 = arith.constant 0 : index
    %6 = vector.load %arg3[%c0_7, %c0_8, %c0_9] : memref<3x32x12xbf16, #tpu.memory_space<vmem>>, vector<1x32x12xbf16>
    %7 = vector.shape_cast %6 : vector<1x32x12xbf16> to vector<32x12xbf16>
    %cst = arith.constant dense<0.000000e+00> : vector<32x64xf32>
    %8 = tpu.matmul %7, %1, %cst {dimension_numbers = #tpu.dot_dimension_numbers<[1], [1], [0], [0], [0, 0, 1, 0], [], []>} : vector<32x12xbf16>, vector<64x12xbf16>, vector<32x64xf32> -> vector<32x64xf32>
    %c1 = arith.constant 1 : index
    %c0_10 = arith.constant 0 : index
    %c0_11 = arith.constant 0 : index
    %9 = vector.load %arg3[%c1, %c0_10, %c0_11] : memref<3x32x12xbf16, #tpu.memory_space<vmem>>, vector<1x32x12xbf16>
    %10 = vector.shape_cast %9 : vector<1x32x12xbf16> to vector<32x12xbf16>
    %cst_12 = arith.constant dense<0.000000e+00> : vector<32x64xf32>
    %11 = tpu.matmul %10, %5, %cst_12 {dimension_numbers = #tpu.dot_dimension_numbers<[1], [1], [0], [0], [0, 0, 1, 0], [], []>} : vector<32x12xbf16>, vector<64x12xbf16>, vector<32x64xf32> -> vector<32x64xf32>
    %12 = arith.addf %8, %11 : vector<32x64xf32>
    %c2 = arith.constant 2 : index
    %c0_13 = arith.constant 0 : index
    %c0_14 = arith.constant 0 : index
    %13 = vector.load %arg3[%c2, %c0_13, %c0_14] : memref<3x32x12xbf16, #tpu.memory_space<vmem>>, vector<1x32x12xbf16>
    %14 = vector.shape_cast %13 : vector<1x32x12xbf16> to vector<32x12xbf16>
    %cst_15 = arith.constant dense<0.000000e+00> : vector<32x64xf32>
    %15 = tpu.matmul %14, %3, %cst_15 {dimension_numbers = #tpu.dot_dimension_numbers<[1], [1], [0], [0], [0, 0, 1, 0], [], []>} : vector<32x12xbf16>, vector<64x12xbf16>, vector<32x64xf32> -> vector<32x64xf32>
    %16 = arith.addf %12, %15 : vector<32x64xf32>
    %c0_16 = arith.constant 0 : index
    %c0_17 = arith.constant 0 : index
    %17 = vector.load %arg4[%c0_16, %c0_17] : memref<32x8xf32, #tpu.memory_space<vmem>>, vector<32x1xf32>
    %18 = vector.broadcast %17 : vector<32x1xf32> to vector<32x64xf32>
    %19 = arith.addf %16, %18 : vector<32x64xf32>
    %20 = arith.truncf %19 : vector<32x64xf32> to vector<32x64xbf16>
    %c0_18 = arith.constant 0 : index
    %c0_19 = arith.constant 0 : index
    %c0_20 = arith.constant 0 : index
    %21 = vector.load %arg5[%c0_18, %c0_19, %c0_20] : memref<1x32x64xbf16, #tpu.memory_space<vmem>>, vector<1x32x64xbf16>
    %22 = vector.shape_cast %21 : vector<1x32x64xbf16> to vector<32x64xbf16>
    %23 = vector.shape_cast %20 : vector<32x64xbf16> to vector<1x32x64xbf16>
    tpu.vector_store %arg5[%c0_18, %c0_19, %c0_20], %23 {strides = array<i32>} : memref<1x32x64xbf16, #tpu.memory_space<vmem>>, vector<1x32x64xbf16>,
    %cst_21 = arith.constant dense<0.000000e+00> : vector<32xf32>
    %24 = vector.multi_reduction <add>, %19, %cst_21 [1] : vector<32x64xf32> to vector<32xf32>
    %25 = vector.shape_cast %24 : vector<32xf32> to vector<32x1xf32>
    %c0_22 = arith.constant 0 : index
    %c0_23 = arith.constant 0 : index
    %c0_24 = arith.constant 0 : index
    %26 = vector.load %arg6[%c0_22, %c0_23, %c0_24] : memref<1x32x2xf32, #tpu.memory_space<vmem>>, vector<1x32x1xf32>
    %27 = vector.shape_cast %26 : vector<1x32x1xf32> to vector<32x1xf32>
    %28 = vector.shape_cast %25 : vector<32x1xf32> to vector<1x32x1xf32>
    tpu.vector_store %arg6[%c0_22, %c0_23, %c0_24], %28 {strides = array<i32>} : memref<1x32x2xf32, #tpu.memory_space<vmem>>, vector<1x32x1xf32>,
    %29 = arith.mulf %19, %19 : vector<32x64xf32>
    %cst_25 = arith.constant dense<0.000000e+00> : vector<32xf32>
    %30 = vector.multi_reduction <add>, %29, %cst_25 [1] : vector<32x64xf32> to vector<32xf32>
    %31 = vector.shape_cast %30 : vector<32xf32> to vector<32x1xf32>
    %c0_26 = arith.constant 0 : index
    %c0_27 = arith.constant 0 : index
    %c1_28 = arith.constant 1 : index
    %32 = vector.load %arg6[%c0_26, %c0_27, %c1_28] : memref<1x32x2xf32, #tpu.memory_space<vmem>>, vector<1x32x1xf32>
    %33 = vector.shape_cast %32 : vector<1x32x1xf32> to vector<32x1xf32>
    %34 = vector.shape_cast %31 : vector<32x1xf32> to vector<1x32x1xf32>
    tpu.vector_store %arg6[%c0_26, %c0_27, %c1_28], %34 {strides = array<i32>} : memref<1x32x2xf32, #tpu.memory_space<vmem>>, vector<1x32x1xf32>,
    return
  }
  func.func @transform_0(%arg0: i32) -> (i32, i32, i32) {
    %c0_i32 = arith.constant 0 : i32
    %c0_i32_0 = arith.constant 0 : i32
    %c0_i32_1 = arith.constant 0 : i32
    return %arg0, %c0_i32, %c0_i32_0 : i32, i32, i32
  }
  func.func @transform_1(%arg0: i32) -> (i32, i32, i32) {
    %c0_i32 = arith.constant 0 : i32
    %c0_i32_0 = arith.constant 0 : i32
    %c0_i32_1 = arith.constant 0 : i32
    return %arg0, %c0_i32, %c0_i32_0 : i32, i32, i32
  }
  func.func @transform_2(%arg0: i32) -> (i32, i32, i32) {
    %c0_i32 = arith.constant 0 : i32
    %c0_i32_0 = arith.constant 0 : i32
    %c0_i32_1 = arith.constant 0 : i32
    %c0_i32_2 = arith.constant 0 : i32
    return %c0_i32, %c0_i32_0, %c0_i32_1 : i32, i32, i32
  }
  func.func @transform_3(%arg0: i32) -> (i32, i32) {
    %c0_i32 = arith.constant 0 : i32
    %c0_i32_0 = arith.constant 0 : i32
    %c0_i32_1 = arith.constant 0 : i32
    return %c0_i32, %c0_i32_0 : i32, i32
  }
  func.func @transform_4(%arg0: i32) -> (i32, i32, i32) {
    %c0_i32 = arith.constant 0 : i32
    %c0_i32_0 = arith.constant 0 : i32
    %c0_i32_1 = arith.constant 0 : i32
    return %arg0, %c0_i32, %c0_i32_0 : i32, i32, i32
  }
  func.func @transform_5(%arg0: i32) -> (i32, i32, i32) {
    %c0_i32 = arith.constant 0 : i32
    %c0_i32_0 = arith.constant 0 : i32
    %c0_i32_1 = arith.constant 0 : i32
    return %arg0, %c0_i32, %c0_i32_0 : i32, i32, i32
  }
}

module attributes {stable_mosaic.version = 11 : i64} {
  func.func @_out_kernel(%arg0: i32, %arg1: memref<1x32x64xbf16, #tpu.memory_space<vmem>>, %arg2: memref<32x2xf32, #tpu.memory_space<vmem>>, %arg3: memref<32x8xf32, #tpu.memory_space<vmem>>, %arg4: memref<2x2x32xbf16, #tpu.memory_space<vmem>>, %arg5: memref<2x32x2xbf16, #tpu.memory_space<vmem>>, %arg6: memref<1x32x64xf32, #tpu.memory_space<vmem>>) attributes {dimension_semantics = [#tpu.dimension_semantics<parallel>], iteration_bounds = array<i64: 2>, scalar_prefetch = 0 : i64, scratch_operands = 0 : i64, tpu.core_type = #tpu.core_type<tc>, window_params = [{transform_indices = @transform_0, window_bounds = array<i64: 1, 32, 64>}, {pipeline_mode = #tpu.pipeline_mode<synchronous>, transform_indices = @transform_1, window_bounds = array<i64: 32, 2>}, {pipeline_mode = #tpu.pipeline_mode<synchronous>, transform_indices = @transform_2, window_bounds = array<i64: 32, 8>}, {pipeline_mode = #tpu.pipeline_mode<synchronous>, transform_indices = @transform_3, window_bounds = array<i64: 2, 2, 32>}, {pipeline_mode = #tpu.pipeline_mode<synchronous>, transform_indices = @transform_4, window_bounds = array<i64: 2, 32, 2>}, {transform_indices = @transform_5, window_bounds = array<i64: 1, 32, 64>}]} {
    %c0 = arith.constant 0 : index
    %c0_0 = arith.constant 0 : index
    %c0_1 = arith.constant 0 : index
    %0 = vector.load %arg1[%c0, %c0_0, %c0_1] : memref<1x32x64xbf16, #tpu.memory_space<vmem>>, vector<1x32x64xbf16>
    %1 = vector.shape_cast %0 : vector<1x32x64xbf16> to vector<32x64xbf16>
    %2 = arith.extf %1 : vector<32x64xbf16> to vector<32x64xf32>
    %c0_2 = arith.constant 0 : index
    %c0_3 = arith.constant 0 : index
    %3 = vector.load %arg2[%c0_2, %c0_3] : memref<32x2xf32, #tpu.memory_space<vmem>>, vector<32x1xf32>
    %4 = vector.broadcast %3 : vector<32x1xf32> to vector<32x64xf32>
    %5 = arith.mulf %2, %4 : vector<32x64xf32>
    %c0_4 = arith.constant 0 : index
    %c1 = arith.constant 1 : index
    %6 = vector.load %arg2[%c0_4, %c1] : memref<32x2xf32, #tpu.memory_space<vmem>>, vector<32x1xf32>
    %7 = vector.broadcast %6 : vector<32x1xf32> to vector<32x64xf32>
    %8 = arith.addf %5, %7 : vector<32x64xf32>
    %cst = arith.constant 0.000000e+00 : f32
    %9 = vector.broadcast %cst : f32 to vector<32x64xf32>
    %10 = arith.maximumf %8, %9 : vector<32x64xf32>
    %cst_5 = arith.constant dense<0.000000e+00> : vector<32xf32>
    %11 = vector.multi_reduction <add>, %10, %cst_5 [1] : vector<32x64xf32> to vector<32xf32>
    %12 = vector.shape_cast %11 : vector<32xf32> to vector<32x1xf32>
    %cst_6 = arith.constant 1.562500e-02 : f32
    %13 = vector.broadcast %cst_6 : f32 to vector<32x1xf32>
    %14 = arith.mulf %12, %13 : vector<32x1xf32>
    %15 = arith.truncf %14 : vector<32x1xf32> to vector<32x1xbf16>
    %c1_7 = arith.constant 1 : index
    %c0_8 = arith.constant 0 : index
    %c0_9 = arith.constant 0 : index
    %16 = vector.load %arg4[%c1_7, %c0_8, %c0_9] : memref<2x2x32xbf16, #tpu.memory_space<vmem>>, vector<1x2x32xbf16>
    %17 = vector.shape_cast %16 : vector<1x2x32xbf16> to vector<2x32xbf16>
    %cst_10 = arith.constant dense<0.000000e+00> : vector<2x1xf32>
    %18 = tpu.matmul %17, %15, %cst_10 {dimension_numbers = #tpu.dot_dimension_numbers<[1], [0], [0], [1], [0, 0, 1, 1], [], []>} : vector<2x32xbf16>, vector<32x1xbf16>, vector<2x1xf32> -> vector<2x1xf32>
    %c0_11 = arith.constant 0 : index
    %c4 = arith.constant 4 : index
    %19 = vector.load %arg3[%c0_11, %c4] : memref<32x8xf32, #tpu.memory_space<vmem>>, vector<2x1xf32>
    %20 = arith.addf %18, %19 : vector<2x1xf32>
    %cst_12 = arith.constant 0.000000e+00 : f32
    %21 = vector.broadcast %cst_12 : f32 to vector<2x1xf32>
    %22 = arith.maximumf %20, %21 : vector<2x1xf32>
    %c1_13 = arith.constant 1 : index
    %c0_14 = arith.constant 0 : index
    %c0_15 = arith.constant 0 : index
    %23 = vector.load %arg5[%c1_13, %c0_14, %c0_15] : memref<2x32x2xbf16, #tpu.memory_space<vmem>>, vector<1x32x2xbf16>
    %24 = vector.shape_cast %23 : vector<1x32x2xbf16> to vector<32x2xbf16>
    %25 = arith.truncf %22 : vector<2x1xf32> to vector<2x1xbf16>
    %cst_16 = arith.constant dense<0.000000e+00> : vector<32x1xf32>
    %26 = tpu.matmul %24, %25, %cst_16 {dimension_numbers = #tpu.dot_dimension_numbers<[1], [0], [0], [1], [0, 0, 1, 1], [], []>} : vector<32x2xbf16>, vector<2x1xbf16>, vector<32x1xf32> -> vector<32x1xf32>
    %c0_17 = arith.constant 0 : index
    %c5 = arith.constant 5 : index
    %27 = vector.load %arg3[%c0_17, %c5] : memref<32x8xf32, #tpu.memory_space<vmem>>, vector<32x1xf32>
    %28 = arith.addf %26, %27 : vector<32x1xf32>
    %29 = arith.negf %28 : vector<32x1xf32>
    %30 = math.exp %29 : vector<32x1xf32>
    %cst_18 = arith.constant 1.000000e+00 : f32
    %31 = vector.broadcast %cst_18 : f32 to vector<32x1xf32>
    %32 = arith.addf %31, %30 : vector<32x1xf32>
    %33 = arith.divf %31, %32 : vector<32x1xf32>
    %34 = vector.broadcast %33 : vector<32x1xf32> to vector<32x64xf32>
    %35 = arith.mulf %10, %34 : vector<32x64xf32>
    %c0_19 = arith.constant 0 : index
    %c0_20 = arith.constant 0 : index
    %c0_21 = arith.constant 0 : index
    %36 = vector.load %arg6[%c0_19, %c0_20, %c0_21] : memref<1x32x64xf32, #tpu.memory_space<vmem>>, vector<1x32x64xf32>
    %37 = vector.shape_cast %36 : vector<1x32x64xf32> to vector<32x64xf32>
    %38 = vector.shape_cast %35 : vector<32x64xf32> to vector<1x32x64xf32>
    tpu.vector_store %arg6[%c0_19, %c0_20, %c0_21], %38 {strides = array<i32>} : memref<1x32x64xf32, #tpu.memory_space<vmem>>, vector<1x32x64xf32>,
    return
  }
  func.func @transform_0(%arg0: i32) -> (i32, i32, i32) {
    %c0_i32 = arith.constant 0 : i32
    %c0_i32_0 = arith.constant 0 : i32
    %c0_i32_1 = arith.constant 0 : i32
    return %arg0, %c0_i32, %c0_i32_0 : i32, i32, i32
  }
  func.func @transform_1(%arg0: i32) -> (i32, i32) {
    %c0_i32 = arith.constant 0 : i32
    %c0_i32_0 = arith.constant 0 : i32
    %c0_i32_1 = arith.constant 0 : i32
    return %c0_i32, %c0_i32_0 : i32, i32
  }
  func.func @transform_2(%arg0: i32) -> (i32, i32) {
    %c0_i32 = arith.constant 0 : i32
    %c0_i32_0 = arith.constant 0 : i32
    %c0_i32_1 = arith.constant 0 : i32
    return %c0_i32, %c0_i32_0 : i32, i32
  }
  func.func @transform_3(%arg0: i32) -> (i32, i32, i32) {
    %c0_i32 = arith.constant 0 : i32
    %c0_i32_0 = arith.constant 0 : i32
    %c0_i32_1 = arith.constant 0 : i32
    %c0_i32_2 = arith.constant 0 : i32
    return %c0_i32, %c0_i32_0, %c0_i32_1 : i32, i32, i32
  }
  func.func @transform_4(%arg0: i32) -> (i32, i32, i32) {
    %c0_i32 = arith.constant 0 : i32
    %c0_i32_0 = arith.constant 0 : i32
    %c0_i32_1 = arith.constant 0 : i32
    %c0_i32_2 = arith.constant 0 : i32
    return %c0_i32, %c0_i32_0, %c0_i32_1 : i32, i32, i32
  }
  func.func @transform_5(%arg0: i32) -> (i32, i32, i32) {
    %c0_i32 = arith.constant 0 : i32
    %c0_i32_0 = arith.constant 0 : i32
    %c0_i32_1 = arith.constant 0 : i32
    return %arg0, %c0_i32, %c0_i32_0 : i32, i32, i32
  }
}

module attributes {stable_mosaic.version = 11 : i64} {
  func.func @_mid_kernel(%arg0: i32, %arg1: memref<1x32x64xbf16, #tpu.memory_space<vmem>>, %arg2: memref<1x32x64xf32, #tpu.memory_space<vmem>>, %arg3: memref<32x2xf32, #tpu.memory_space<vmem>>, %arg4: memref<32x8xf32, #tpu.memory_space<vmem>>, %arg5: memref<2x2x32xbf16, #tpu.memory_space<vmem>>, %arg6: memref<2x32x2xbf16, #tpu.memory_space<vmem>>, %arg7: memref<32x32xbf16, #tpu.memory_space<vmem>>, %arg8: memref<32x32xbf16, #tpu.memory_space<vmem>>, %arg9: memref<1x32x64xbf16, #tpu.memory_space<vmem>>, %arg10: memref<1x32x2xf32, #tpu.memory_space<vmem>>) attributes {dimension_semantics = [#tpu.dimension_semantics<parallel>], iteration_bounds = array<i64: 2>, scalar_prefetch = 0 : i64, scratch_operands = 0 : i64, tpu.core_type = #tpu.core_type<tc>, window_params = [{transform_indices = @transform_0, window_bounds = array<i64: 1, 32, 64>}, {transform_indices = @transform_1, window_bounds = array<i64: 1, 32, 64>}, {pipeline_mode = #tpu.pipeline_mode<synchronous>, transform_indices = @transform_2, window_bounds = array<i64: 32, 2>}, {pipeline_mode = #tpu.pipeline_mode<synchronous>, transform_indices = @transform_3, window_bounds = array<i64: 32, 8>}, {pipeline_mode = #tpu.pipeline_mode<synchronous>, transform_indices = @transform_4, window_bounds = array<i64: 2, 2, 32>}, {pipeline_mode = #tpu.pipeline_mode<synchronous>, transform_indices = @transform_5, window_bounds = array<i64: 2, 32, 2>}, {pipeline_mode = #tpu.pipeline_mode<synchronous>, transform_indices = @transform_6, window_bounds = array<i64: 32, 32>}, {pipeline_mode = #tpu.pipeline_mode<synchronous>, transform_indices = @transform_7, window_bounds = array<i64: 32, 32>}, {transform_indices = @transform_8, window_bounds = array<i64: 1, 32, 64>}, {transform_indices = @transform_9, window_bounds = array<i64: 1, 32, 2>}]} {
    %c0 = arith.constant 0 : index
    %c0_0 = arith.constant 0 : index
    %c0_1 = arith.constant 0 : index
    %0 = vector.load %arg1[%c0, %c0_0, %c0_1] : memref<1x32x64xbf16, #tpu.memory_space<vmem>>, vector<1x32x64xbf16>
    %1 = vector.shape_cast %0 : vector<1x32x64xbf16> to vector<32x64xbf16>
    %2 = arith.extf %1 : vector<32x64xbf16> to vector<32x64xf32>
    %c0_2 = arith.constant 0 : index
    %c0_3 = arith.constant 0 : index
    %3 = vector.load %arg3[%c0_2, %c0_3] : memref<32x2xf32, #tpu.memory_space<vmem>>, vector<32x1xf32>
    %4 = vector.broadcast %3 : vector<32x1xf32> to vector<32x64xf32>
    %5 = arith.mulf %2, %4 : vector<32x64xf32>
    %c0_4 = arith.constant 0 : index
    %c1 = arith.constant 1 : index
    %6 = vector.load %arg3[%c0_4, %c1] : memref<32x2xf32, #tpu.memory_space<vmem>>, vector<32x1xf32>
    %7 = vector.broadcast %6 : vector<32x1xf32> to vector<32x64xf32>
    %8 = arith.addf %5, %7 : vector<32x64xf32>
    %cst = arith.constant 0.000000e+00 : f32
    %9 = vector.broadcast %cst : f32 to vector<32x64xf32>
    %10 = arith.maximumf %8, %9 : vector<32x64xf32>
    %cst_5 = arith.constant dense<0.000000e+00> : vector<32xf32>
    %11 = vector.multi_reduction <add>, %10, %cst_5 [1] : vector<32x64xf32> to vector<32xf32>
    %12 = vector.shape_cast %11 : vector<32xf32> to vector<32x1xf32>
    %cst_6 = arith.constant 1.562500e-02 : f32
    %13 = vector.broadcast %cst_6 : f32 to vector<32x1xf32>
    %14 = arith.mulf %12, %13 : vector<32x1xf32>
    %15 = arith.truncf %14 : vector<32x1xf32> to vector<32x1xbf16>
    %c0_7 = arith.constant 0 : index
    %c0_8 = arith.constant 0 : index
    %c0_9 = arith.constant 0 : index
    %16 = vector.load %arg5[%c0_7, %c0_8, %c0_9] : memref<2x2x32xbf16, #tpu.memory_space<vmem>>, vector<1x2x32xbf16>
    %17 = vector.shape_cast %16 : vector<1x2x32xbf16> to vector<2x32xbf16>
    %cst_10 = arith.constant dense<0.000000e+00> : vector<2x1xf32>
    %18 = tpu.matmul %17, %15, %cst_10 {dimension_numbers = #tpu.dot_dimension_numbers<[1], [0], [0], [1], [0, 0, 1, 1], [], []>} : vector<2x32xbf16>, vector<32x1xbf16>, vector<2x1xf32> -> vector<2x1xf32>
    %c0_11 = arith.constant 0 : index
    %c1_12 = arith.constant 1 : index
    %19 = vector.load %arg4[%c0_11, %c1_12] : memref<32x8xf32, #tpu.memory_space<vmem>>, vector<2x1xf32>
    %20 = arith.addf %18, %19 : vector<2x1xf32>
    %cst_13 = arith.constant 0.000000e+00 : f32
    %21 = vector.broadcast %cst_13 : f32 to vector<2x1xf32>
    %22 = arith.maximumf %20, %21 : vector<2x1xf32>
    %c0_14 = arith.constant 0 : index
    %c0_15 = arith.constant 0 : index
    %c0_16 = arith.constant 0 : index
    %23 = vector.load %arg6[%c0_14, %c0_15, %c0_16] : memref<2x32x2xbf16, #tpu.memory_space<vmem>>, vector<1x32x2xbf16>
    %24 = vector.shape_cast %23 : vector<1x32x2xbf16> to vector<32x2xbf16>
    %25 = arith.truncf %22 : vector<2x1xf32> to vector<2x1xbf16>
    %cst_17 = arith.constant dense<0.000000e+00> : vector<32x1xf32>
    %26 = tpu.matmul %24, %25, %cst_17 {dimension_numbers = #tpu.dot_dimension_numbers<[1], [0], [0], [1], [0, 0, 1, 1], [], []>} : vector<32x2xbf16>, vector<2x1xbf16>, vector<32x1xf32> -> vector<32x1xf32>
    %c0_18 = arith.constant 0 : index
    %c2 = arith.constant 2 : index
    %27 = vector.load %arg4[%c0_18, %c2] : memref<32x8xf32, #tpu.memory_space<vmem>>, vector<32x1xf32>
    %28 = arith.addf %26, %27 : vector<32x1xf32>
    %29 = arith.negf %28 : vector<32x1xf32>
    %30 = math.exp %29 : vector<32x1xf32>
    %cst_19 = arith.constant 1.000000e+00 : f32
    %31 = vector.broadcast %cst_19 : f32 to vector<32x1xf32>
    %32 = arith.addf %31, %30 : vector<32x1xf32>
    %33 = arith.divf %31, %32 : vector<32x1xf32>
    %34 = vector.broadcast %33 : vector<32x1xf32> to vector<32x64xf32>
    %35 = arith.mulf %10, %34 : vector<32x64xf32>
    %36 = arith.truncf %35 : vector<32x64xf32> to vector<32x64xbf16>
    %c0_20 = arith.constant 0 : index
    %c0_21 = arith.constant 0 : index
    %37 = vector.load %arg7[%c0_20, %c0_21] : memref<32x32xbf16, #tpu.memory_space<vmem>>, vector<32x32xbf16>
    %c0_22 = arith.constant 0 : index
    %c0_23 = arith.constant 0 : index
    %c0_24 = arith.constant 0 : index
    %38 = vector.load %arg2[%c0_22, %c0_23, %c0_24] : memref<1x32x64xf32, #tpu.memory_space<vmem>>, vector<1x32x64xf32>
    %39 = vector.shape_cast %38 : vector<1x32x64xf32> to vector<32x64xf32>
    %40 = arith.truncf %39 : vector<32x64xf32> to vector<32x64xbf16>
    %cst_25 = arith.constant dense<0.000000e+00> : vector<32x64xf32>
    %41 = tpu.matmul %37, %40, %cst_25 {dimension_numbers = #tpu.dot_dimension_numbers<[1], [0], [0], [1], [0, 0, 1, 1], [], []>} : vector<32x32xbf16>, vector<32x64xbf16>, vector<32x64xf32> -> vector<32x64xf32>
    %c0_26 = arith.constant 0 : index
    %c0_27 = arith.constant 0 : index
    %42 = vector.load %arg8[%c0_26, %c0_27] : memref<32x32xbf16, #tpu.memory_space<vmem>>, vector<32x32xbf16>
    %cst_28 = arith.constant dense<0.000000e+00> : vector<32x64xf32>
    %43 = tpu.matmul %42, %36, %cst_28 {dimension_numbers = #tpu.dot_dimension_numbers<[1], [0], [0], [1], [0, 0, 1, 1], [], []>} : vector<32x32xbf16>, vector<32x64xbf16>, vector<32x64xf32> -> vector<32x64xf32>
    %44 = arith.addf %41, %43 : vector<32x64xf32>
    %c0_29 = arith.constant 0 : index
    %c3 = arith.constant 3 : index
    %45 = vector.load %arg4[%c0_29, %c3] : memref<32x8xf32, #tpu.memory_space<vmem>>, vector<32x1xf32>
    %46 = vector.broadcast %45 : vector<32x1xf32> to vector<32x64xf32>
    %47 = arith.addf %44, %46 : vector<32x64xf32>
    %48 = arith.truncf %47 : vector<32x64xf32> to vector<32x64xbf16>
    %c0_30 = arith.constant 0 : index
    %c0_31 = arith.constant 0 : index
    %c0_32 = arith.constant 0 : index
    %49 = vector.load %arg9[%c0_30, %c0_31, %c0_32] : memref<1x32x64xbf16, #tpu.memory_space<vmem>>, vector<1x32x64xbf16>
    %50 = vector.shape_cast %49 : vector<1x32x64xbf16> to vector<32x64xbf16>
    %51 = vector.shape_cast %48 : vector<32x64xbf16> to vector<1x32x64xbf16>
    tpu.vector_store %arg9[%c0_30, %c0_31, %c0_32], %51 {strides = array<i32>} : memref<1x32x64xbf16, #tpu.memory_space<vmem>>, vector<1x32x64xbf16>,
    %cst_33 = arith.constant dense<0.000000e+00> : vector<32xf32>
    %52 = vector.multi_reduction <add>, %47, %cst_33 [1] : vector<32x64xf32> to vector<32xf32>
    %53 = vector.shape_cast %52 : vector<32xf32> to vector<32x1xf32>
    %c0_34 = arith.constant 0 : index
    %c0_35 = arith.constant 0 : index
    %c0_36 = arith.constant 0 : index
    %54 = vector.load %arg10[%c0_34, %c0_35, %c0_36] : memref<1x32x2xf32, #tpu.memory_space<vmem>>, vector<1x32x1xf32>
    %55 = vector.shape_cast %54 : vector<1x32x1xf32> to vector<32x1xf32>
    %56 = vector.shape_cast %53 : vector<32x1xf32> to vector<1x32x1xf32>
    tpu.vector_store %arg10[%c0_34, %c0_35, %c0_36], %56 {strides = array<i32>} : memref<1x32x2xf32, #tpu.memory_space<vmem>>, vector<1x32x1xf32>,
    %57 = arith.mulf %47, %47 : vector<32x64xf32>
    %cst_37 = arith.constant dense<0.000000e+00> : vector<32xf32>
    %58 = vector.multi_reduction <add>, %57, %cst_37 [1] : vector<32x64xf32> to vector<32xf32>
    %59 = vector.shape_cast %58 : vector<32xf32> to vector<32x1xf32>
    %c0_38 = arith.constant 0 : index
    %c0_39 = arith.constant 0 : index
    %c1_40 = arith.constant 1 : index
    %60 = vector.load %arg10[%c0_38, %c0_39, %c1_40] : memref<1x32x2xf32, #tpu.memory_space<vmem>>, vector<1x32x1xf32>
    %61 = vector.shape_cast %60 : vector<1x32x1xf32> to vector<32x1xf32>
    %62 = vector.shape_cast %59 : vector<32x1xf32> to vector<1x32x1xf32>
    tpu.vector_store %arg10[%c0_38, %c0_39, %c1_40], %62 {strides = array<i32>} : memref<1x32x2xf32, #tpu.memory_space<vmem>>, vector<1x32x1xf32>,
    return
  }
  func.func @transform_0(%arg0: i32) -> (i32, i32, i32) {
    %c0_i32 = arith.constant 0 : i32
    %c0_i32_0 = arith.constant 0 : i32
    %c0_i32_1 = arith.constant 0 : i32
    return %arg0, %c0_i32, %c0_i32_0 : i32, i32, i32
  }
  func.func @transform_1(%arg0: i32) -> (i32, i32, i32) {
    %c0_i32 = arith.constant 0 : i32
    %c0_i32_0 = arith.constant 0 : i32
    %c0_i32_1 = arith.constant 0 : i32
    return %arg0, %c0_i32, %c0_i32_0 : i32, i32, i32
  }
  func.func @transform_2(%arg0: i32) -> (i32, i32) {
    %c0_i32 = arith.constant 0 : i32
    %c0_i32_0 = arith.constant 0 : i32
    %c0_i32_1 = arith.constant 0 : i32
    return %c0_i32, %c0_i32_0 : i32, i32
  }
  func.func @transform_3(%arg0: i32) -> (i32, i32) {
    %c0_i32 = arith.constant 0 : i32
    %c0_i32_0 = arith.constant 0 : i32
    %c0_i32_1 = arith.constant 0 : i32
    return %c0_i32, %c0_i32_0 : i32, i32
  }
  func.func @transform_4(%arg0: i32) -> (i32, i32, i32) {
    %c0_i32 = arith.constant 0 : i32
    %c0_i32_0 = arith.constant 0 : i32
    %c0_i32_1 = arith.constant 0 : i32
    %c0_i32_2 = arith.constant 0 : i32
    return %c0_i32, %c0_i32_0, %c0_i32_1 : i32, i32, i32
  }
  func.func @transform_5(%arg0: i32) -> (i32, i32, i32) {
    %c0_i32 = arith.constant 0 : i32
    %c0_i32_0 = arith.constant 0 : i32
    %c0_i32_1 = arith.constant 0 : i32
    %c0_i32_2 = arith.constant 0 : i32
    return %c0_i32, %c0_i32_0, %c0_i32_1 : i32, i32, i32
  }
  func.func @transform_6(%arg0: i32) -> (i32, i32) {
    %c0_i32 = arith.constant 0 : i32
    %c0_i32_0 = arith.constant 0 : i32
    %c0_i32_1 = arith.constant 0 : i32
    return %c0_i32, %c0_i32_0 : i32, i32
  }
  func.func @transform_7(%arg0: i32) -> (i32, i32) {
    %c0_i32 = arith.constant 0 : i32
    %c0_i32_0 = arith.constant 0 : i32
    %c0_i32_1 = arith.constant 0 : i32
    return %c0_i32, %c0_i32_0 : i32, i32
  }
  func.func @transform_8(%arg0: i32) -> (i32, i32, i32) {
    %c0_i32 = arith.constant 0 : i32
    %c0_i32_0 = arith.constant 0 : i32
    %c0_i32_1 = arith.constant 0 : i32
    return %arg0, %c0_i32, %c0_i32_0 : i32, i32, i32
  }
  func.func @transform_9(%arg0: i32) -> (i32, i32, i32) {
    %c0_i32 = arith.constant 0 : i32
    %c0_i32_0 = arith.constant 0 : i32
    %c0_i32_1 = arith.constant 0 : i32
    return %arg0, %c0_i32, %c0_i32_0 : i32, i32, i32
  }
}

</mosaic_0001>

<llo_original>
// kernel: side_se_conv2d.5
$region0: #{side_se_conv2d.5}
  #allocation0 [shape = 'u32[]', space=smem, size = 0x4, offset = 0x4, fixed_abs, tag = 'smem constant byte address 0x4 - core index']
  #allocation1 [shape = 'u32[144,128]{1,0:T(1,128)}', space=vmem, size = 0x12000, scoped, tag = 'internal scratch']
  %s0 = inlined_call_operand.vmem [shape: bf16[2,32,64], index: 0, kind: input, shape index: {}]
  %s1 = inlined_call_operand.vmem [shape: f32[32,2], index: 1, kind: input, shape index: {}]
  %s2 = inlined_call_operand.vmem [shape: f32[32,8], index: 2, kind: input, shape index: {}]
  %s3 = inlined_call_operand.vmem [shape: bf16[2,2,32], index: 3, kind: input, shape index: {}]
  %s4 = inlined_call_operand.vmem [shape: bf16[2,32,2], index: 4, kind: input, shape index: {}]
  %s5 = inlined_call_operand.vmem [shape: f32[2,32,64], index: 5, kind: output, shape index: {}]
  %s6 = sld [smem:[#allocation0]]
  $region53: #{side_se_conv2d.5} parent=0
    _
  %s8 = ssub.s32 1, %s6
  %s9 = scalar_select 0, %s8, %s6
  loop: start=0, step=1, limit=4
  $region2: #{side_se_conv2d.5} parent=0 // loop_pre_header
    _
  $region3: #{side_se_conv2d.5} parent=0 // loop_header
    %s11 = sphi 0, %s15
    %p12 = scmp.ge.s32.totalorder %s11, 4
    %s21 = sphi 0, %s23
    %s24 = sphi 0, %s21
    %s25 = sphi 0, %s24
    %s41 = sphi 0, %s25
    %s45 = sphi 0, %s45
    %s47 = sphi 0, %s45
    %s48 = sphi 0, %s47
    %s62 = sphi 0, %s48
    %s66 = sphi 0, %s66
    %s68 = sphi 0, %s66
    %s69 = sphi 0, %s68
    %s83 = sphi 0, %s69
    %s87 = sphi 0, %s87
    %s89 = sphi 0, %s87
    %s90 = sphi 0, %s89
    %s104 = sphi 0, %s90
    %s108 = sphi 0, %s108
    %s110 = sphi 0, %s108
    %s111 = sphi 0, %s110
    %s125 = sphi 0, %s111
    %s131 = sphi 0, %s133
    %s134 = sphi 0, %s131
    %s135 = sphi 0, %s134
    %s151 = sphi 0, %s135
  $region4: #{side_se_conv2d.5} parent=0 // loop_header_branch
    %14 = sbr.rel (%p12) target = $region8
  $region5: #{side_se_conv2d.5} parent=0 // loop_body
    %s16 = ssub.s32 %s11, 1
    %s17 = ssub.s32 %s11, 2
    %s18 = sadd.s32 %s11, 1
    %s19 = ssub.s32 %s11, %s18
    %p20 = scmp.eq.s32.totalorder %s19, 0
    %s22 = sadd.s32 %s21, 1
    %s23 = scalar_select %p20, %s21, %s22
    %p26 = pneg %p20
    %p27 = scmp.eq.s32.totalorder %s11, 1
    %p28 = por %p26, %p27
    %p29 = scmp.ne.s32.totalorder %s21, %s24
    %p30 = scmp.eq.s32.totalorder %s11, 0
    %p31 = por %p29, %p30
    %p32 = scmp.ne.s32.totalorder %s21, %s24
    %p33 = scmp.eq.s32.totalorder %s16, 1
    %p34 = por %p32, %p33
    %p35 = scmp.ne.s32.totalorder %s24, %s25
    %p36 = scmp.eq.s32.totalorder %s16, 0
    %p37 = por %p35, %p36
    %p38 = scmp.ne.s32.totalorder %s24, %s25
    %p39 = scmp.eq.s32.totalorder %s17, 1
    %p40 = por %p38, %p39
    %p42 = scmp.ne.s32.totalorder %s25, %s41
    %p43 = scmp.eq.s32.totalorder %s17, 0
    %p44 = por %p42, %p43
    %s46 = sadd.s32 %s45, 1
    %p49 = scmp.eq.s32.totalorder %s11, 1
    %p50 = scmp.ne.s32.totalorder %s45, %s47
    %p51 = scmp.eq.s32.totalorder %s11, 0
    %p52 = por %p50, %p51
    %p53 = scmp.ne.s32.totalorder %s45, %s47
    %p54 = scmp.eq.s32.totalorder %s16, 1
    %p55 = por %p53, %p54
    %p56 = scmp.ne.s32.totalorder %s47, %s48
    %p57 = scmp.eq.s32.totalorder %s16, 0
    %p58 = por %p56, %p57
    %p59 = scmp.ne.s32.totalorder %s47, %s48
    %p60 = scmp.eq.s32.totalorder %s17, 1
    %p61 = por %p59, %p60
    %p63 = scmp.ne.s32.totalorder %s48, %s62
    %p64 = scmp.eq.s32.totalorder %s17, 0
    %p65 = por %p63, %p64
    %s67 = sadd.s32 %s66, 1
    %p70 = scmp.eq.s32.totalorder %s11, 1
    %p71 = scmp.ne.s32.totalorder %s66, %s68
    %p72 = scmp.eq.s32.totalorder %s11, 0
    %p73 = por %p71, %p72
    %p74 = scmp.ne.s32.totalorder %s66, %s68
    %p75 = scmp.eq.s32.totalorder %s16, 1
    %p76 = por %p74, %p75
    %p77 = scmp.ne.s32.totalorder %s68, %s69
    %p78 = scmp.eq.s32.totalorder %s16, 0
    %p79 = por %p77, %p78
    %p80 = scmp.ne.s32.totalorder %s68, %s69
    %p81 = scmp.eq.s32.totalorder %s17, 1
    %p82 = por %p80, %p81
    %p84 = scmp.ne.s32.totalorder %s69, %s83
    %p85 = scmp.eq.s32.totalorder %s17, 0
    %p86 = por %p84, %p85
    %s88 = sadd.s32 %s87, 1
    %p91 = scmp.eq.s32.totalorder %s11, 1
    %p92 = scmp.ne.s32.totalorder %s87, %s89
    %p93 = scmp.eq.s32.totalorder %s11, 0
    %p94 = por %p92, %p93
    %p95 = scmp.ne.s32.totalorder %s87, %s89
    %p96 = scmp.eq.s32.totalorder %s16, 1
    %p97 = por %p95, %p96
    %p98 = scmp.ne.s32.totalorder %s89, %s90
    %p99 = scmp.eq.s32.totalorder %s16, 0
    %p100 = por %p98, %p99
    %p101 = scmp.ne.s32.totalorder %s89, %s90
    %p102 = scmp.eq.s32.totalorder %s17, 1
    %p103 = por %p101, %p102
    %p105 = scmp.ne.s32.totalorder %s90, %s104
    %p106 = scmp.eq.s32.totalorder %s17, 0
    %p107 = por %p105, %p106
    %s109 = sadd.s32 %s108, 1
    %p112 = scmp.eq.s32.totalorder %s11, 1
    %p113 = scmp.ne.s32.totalorder %s108, %s110
    %p114 = scmp.eq.s32.totalorder %s11, 0
    %p115 = por %p113, %p114
    %p116 = scmp.ne.s32.totalorder %s108, %s110
    %p117 = scmp.eq.s32.totalorder %s16, 1
    %p118 = por %p116, %p117
    %p119 = scmp.ne.s32.totalorder %s110, %s111
    %p120 = scmp.eq.s32.totalorder %s16, 0
    %p121 = por %p119, %p120
    %p122 = scmp.ne.s32.totalorder %s110, %s111
    %p123 = scmp.eq.s32.totalorder %s17, 1
    %p124 = por %p122, %p123
    %p126 = scmp.ne.s32.totalorder %s111, %s125
    %p127 = scmp.eq.s32.totalorder %s17, 0
    %p128 = por %p126, %p127
    %s129 = ssub.s32 %s11, %s18
    %p130 = scmp.eq.s32.totalorder %s129, 0
    %s132 = sadd.s32 %s131, 1
    %s133 = scalar_select %p130, %s131, %s132
    %p136 = pneg %p130
    %p137 = scmp.eq.s32.totalorder %s11, 1
    %p138 = por %p136, %p137
    %p139 = scmp.ne.s32.totalorder %s131, %s134
    %p140 = scmp.eq.s32.totalorder %s11, 0
    %p141 = por %p139, %p140
    %p142 = scmp.ne.s32.totalorder %s131, %s134
    %p143 = scmp.eq.s32.totalorder %s16, 1
    %p144 = por %p142, %p143
    %p145 = scmp.ne.s32.totalorder %s134, %s135
    %p146 = scmp.eq.s32.totalorder %s16, 0
    %p147 = por %p145, %p146
    %p148 = scmp.ne.s32.totalorder %s134, %s135
    %p149 = scmp.eq.s32.totalorder %s17, 1
    %p150 = por %p148, %p149
    %p152 = scmp.ne.s32.totalorder %s135, %s151
    %p153 = scmp.eq.s32.totalorder %s17, 0
    %p154 = por %p152, %p153
    %p155 = scmp.le.s32.totalorder 1, %s11
    %p156 = scmp.lt.s32.totalorder %s11, 3
    %p157 = pnand %p155, %p156
    %p158 = pneg %p157
    // Predicated region
    $region9: #{side_se_conv2d.5} parent=5 // pred_check
      _
    $region10: #{side_se_conv2d.5} parent=5 // pred_check_branch
      %160 = sbr.rel (%p157) target = $region12
    $region11: #{side_se_conv2d.5} parent=5 // pred_region
      %s161 = ssub.s32 %s11, 1
      // Predicated region
      $region13: #{side_se_conv2d.5} parent=11 // pred_check
        %p162 = pneg %p58
      $region14: #{side_se_conv2d.5} parent=11 // pred_check_branch
        %164 = sbr.rel (%p162) target = $region16
      $region15: #{side_se_conv2d.5} parent=11 // pred_region
        _
      $region16: #{side_se_conv2d.5} parent=11 // pred_fallthru
        _
      // Predicated region
      $region17: #{side_se_conv2d.5} parent=11 // pred_check
        %p165 = pneg %p79
      $region18: #{side_se_conv2d.5} parent=11 // pred_check_branch
        %167 = sbr.rel (%p165) target = $region20
      $region19: #{side_se_conv2d.5} parent=11 // pred_region
        _
      $region20: #{side_se_conv2d.5} parent=11 // pred_fallthru
        _
      // Predicated region
      $region21: #{side_se_conv2d.5} parent=11 // pred_check
        %p168 = pneg %p100
      $region22: #{side_se_conv2d.5} parent=11 // pred_check_branch
        %170 = sbr.rel (%p168) target = $region24
      $region23: #{side_se_conv2d.5} parent=11 // pred_region
        _
      $region24: #{side_se_conv2d.5} parent=11 // pred_fallthru
        _
      // Predicated region
      $region25: #{side_se_conv2d.5} parent=11 // pred_check
        %p171 = pneg %p121
      $region26: #{side_se_conv2d.5} parent=11 // pred_check_branch
        %173 = sbr.rel (%p171) target = $region28
      $region27: #{side_se_conv2d.5} parent=11 // pred_region
        _
      $region28: #{side_se_conv2d.5} parent=11 // pred_fallthru
        _
    $region12: #{side_se_conv2d.5} parent=5 // pred_fallthru
      _
    %p174 = scmp.lt.s32.totalorder %s11, 2
    // Predicated region
    $region29: #{side_se_conv2d.5} parent=5 // pred_check
      %p175 = pneg %p174
    $region30: #{side_se_conv2d.5} parent=5 // pred_check_branch
      %177 = sbr.rel (%p175) target = $region32
    $region31: #{side_se_conv2d.5} parent=5 // pred_region
      // Predicated region
      $region33: #{side_se_conv2d.5} parent=31 // pred_check
        %p178 = pneg %p31
      $region34: #{side_se_conv2d.5} parent=31 // pred_check_branch
        %180 = sbr.rel (%p178) target = $region36
      $region35: #{side_se_conv2d.5} parent=31 // pred_region
        %p181 = scmp.lt.s32.totalorder %s11, 1
        %s182 = scalar_select %p181, %s11, 1
        %s183 = smul.addr %s182, 4
        %s184 = smul.addr %s183, 4
        %s185 = scalar_lea.vmem %s0, %s184
      $region36: #{side_se_conv2d.5} parent=31 // pred_fallthru
        _
    $region32: #{side_se_conv2d.5} parent=5 // pred_fallthru
      _
    %p186 = scmp.le.s32.totalorder 1, %s11
    %p187 = scmp.lt.s32.totalorder %s11, 3
    %p188 = pnand %p186, %p187
    %p189 = pneg %p188
    // Predicated region
    $region37: #{side_se_conv2d.5} parent=5 // pred_check
      _
    $region38: #{side_se_conv2d.5} parent=5 // pred_check_branch
      %191 = sbr.rel (%p188) target = $region40
    $region39: #{side_se_conv2d.5} parent=5 // pred_region
      %s192 = ssub.s32 %s11, 1
      %p193 = scmp.lt.s32.totalorder %s16, 1
      %s194 = scalar_select %p193, %s16, 1
      %s195 = smul.addr %s194, 4
      %s196 = smul.addr %s195, 4
      %s197 = scalar_lea.vmem %s0, %s196
      %p198 = pneg %p37
      %p199 = pneg %p34
      %p200 = pneg %p58
      %p201 = pneg %p55
      %p202 = pneg %p79
      %p203 = pneg %p76
      %p204 = pneg %p100
      %p205 = pneg %p97
      %p206 = pneg %p121
      %p207 = pneg %p118
      %p208 = pneg %p147
      %p209 = pneg %p144
      %p210 = scmp.lt.s32.totalorder %s16, 1
      %s211 = scalar_select %p210, %s16, 1
      %s212 = smul.addr %s211, 4
      %s213 = smul.addr %s212, 8
      %s214 = scalar_lea.vmem %s5, %s213
      %p215 = scmp.lt.s32.totalorder %s16, 1
      %s216 = scalar_select %p215, %s16, 1
      %s217 = smul.addr %s216, 4
      %s218 = smul.addr %s217, 4
      %s219 = scalar_lea.vmem %s0, %s218
      %p220 = scmp.lt.s32.totalorder %s16, 1
      %s221 = scalar_select %p220, %s16, 1
      %s222 = smul.addr %s221, 4
      %s223 = smul.addr %s222, 8
      %s224 = scalar_lea.vmem %s5, %s223
      %v226 = vld [vmem:[%s219] sm:$0xf]
      %v227 = vld [vmem:[%s219 + $0x4] sm:$0xf]
      %v228 = vld [vmem:[%s219 + $0x8] sm:$0xf]
      %v229 = vld [vmem:[%s219 + $0xc] sm:$0xf]
      %v230 = vunpack.c.l.bf16 %v226
      %v231 = vunpack.c.l.bf16 %v227
      %v232 = vunpack.c.l.bf16 %v228
      %v233 = vunpack.c.l.bf16 %v229
      %v234 = vld [vmem:[%s1] sm:$0xff]
      %v235 = vld [vmem:[%s1 + $0x8] sm:$0xff]
      %v236 = vld [vmem:[%s1 + $0x10] sm:$0xff]
      %v237 = vld [vmem:[%s1 + $0x18] sm:$0xff]
      %239 = vset.pattern.permute.xlu0 0
      %240 = vperm.xlu0 %239, %v234
      %v241 = vpop.permute.xlu0 %240
      %244 = vset.pattern.permute.xlu0 0
      %245 = vperm.xlu0 %244, %v235
      %v246 = vpop.permute.xlu0 %245
      %249 = vset.pattern.permute.xlu0 0
      %250 = vperm.xlu0 %249, %v236
      %v251 = vpop.permute.xlu0 %250
      %254 = vset.pattern.permute.xlu0 0
      %255 = vperm.xlu0 %254, %v237
      %v256 = vpop.permute.xlu0 %255
      %v258 = vmul.f32 %v230, %v241
      %v259 = vmul.f32 %v231, %v246
      %v260 = vmul.f32 %v232, %v251
      %v261 = vmul.f32 %v233, %v256
      %262 = vset.pattern.permute.xlu0 1
      %263 = vperm.xlu0 %262, %v234
      %v264 = vpop.permute.xlu0 %263
      %266 = vset.pattern.permute.xlu0 1
      %267 = vperm.xlu0 %266, %v235
      %v268 = vpop.permute.xlu0 %267
      %270 = vset.pattern.permute.xlu0 1
      %271 = vperm.xlu0 %270, %v236
      %v272 = vpop.permute.xlu0 %271
      %274 = vset.pattern.permute.xlu0 1
      %275 = vperm.xlu0 %274, %v237
      %v276 = vpop.permute.xlu0 %275
      %v278 = vadd.f32 %v258, %v264
      %v279 = vadd.f32 %v259, %v268
      %v280 = vadd.f32 %v260, %v272
      %v281 = vadd.f32 %v261, %v276
      %v282 = vmax.f32 %v278, 0.0
      %v283 = vmax.f32 %v279, 0.0
      %v284 = vmax.f32 %v280, 0.0
      %v285 = vmax.f32 %v281, 0.0
      %vm286 = vcmask 523264
      %v287 = vsel %vm286, %v282, 0.0
      %288 = vadd.xlane.f32.xlu0 %v287
      %v289 = vpop.xlane.xlu0 %288
      %v290 = vsel %vm286, %v283, 0.0
      %291 = vadd.xlane.f32.xlu0 %v290
      %v292 = vpop.xlane.xlu0 %291
      %v293 = vsel %vm286, %v284, 0.0
      %294 = vadd.xlane.f32.xlu0 %v293
      %v295 = vpop.xlane.xlu0 %294
      %v296 = vsel %vm286, %v285, 0.0
      %297 = vadd.xlane.f32.xlu0 %v296
      %v298 = vpop.xlane.xlu0 %297
      %v299 = vmul.f32 %v289, 0.015625
      %v300 = vmul.f32 %v292, 0.015625
      %v301 = vmul.f32 %v295, 0.015625
      %v302 = vmul.f32 %v298, 0.015625
      %v303 = vpack.c.bf16 %v300, %v299
      %v304 = vpack.c.bf16 %v302, %v301
      %s305 = scalar_lea.vmem %s3, 1
      %v306 = vld [vmem:[%s305] sm:$0x1]
      %v307 = vld [vmem:[%s2] sm:$0x3]
      %309 = vrot.lane.b32.xlu0 %v307, 124
      %v310 = vpop.permute.xlu0 %309
      %vm312 = vcmask 261120
      %v314 = vsel %vm312, %v306, 0
      %316 = vmatprep.subr.bf16.mxu0 0
      %317 = vmatpush1.bf16.msra.mxu0 %v303
      %318 = vmatprep.subr.bf16.mxu0 0
      %319 = vmatpush1.bf16.msra.mxu0 %v304
      %320 = vmatprep.subr.bf16.mxu0 0
      %321 = vmatpush1.bf16.msra.mxu0 0
      %322 = vmatprep.subr.bf16.mxu0 0
      %323 = vmatpush1.bf16.msra.mxu0 0
      %324 = vmatprep.subr.bf16.mxu0 0
      %325 = vmatpush1.bf16.msra.mxu0 0
      %326 = vmatprep.subr.bf16.mxu0 0
      %327 = vmatpush1.bf16.msra.mxu0 0
      %328 = vmatprep.subr.bf16.mxu0 0
      %329 = vmatpush1.bf16.msra.mxu0 0
      %330 = vmatprep.subr.bf16.mxu0 0
      %331 = vmatpush1.bf16.msra.mxu0 0
      %332 = vmatprep.subr.bf16.mxu0 0
      %333 = vmatpush1.bf16.msra.mxu0 0
      %334 = vmatprep.subr.bf16.mxu0 0
      %335 = vmatpush1.bf16.msra.mxu0 0
      %336 = vmatprep.subr.bf16.mxu0 0
      %337 = vmatpush1.bf16.msra.mxu0 0
      %338 = vmatprep.subr.bf16.mxu0 0
      %339 = vmatpush1.bf16.msra.mxu0 0
      %340 = vmatprep.subr.bf16.mxu0 0
      %341 = vmatpush1.bf16.msra.mxu0 0
      %342 = vmatprep.subr.bf16.mxu0 0
      %343 = vmatpush1.bf16.msra.mxu0 0
      %344 = vmatprep.subr.bf16.mxu0 0
      %345 = vmatpush1.bf16.msra.mxu0 0
      %346 = vmatprep.subr.bf16.mxu0 0
      %347 = vmatpush1.bf16.msra.mxu0 0
      %348 = vmatprep.mubr.bf16.mxu0 0
      %349 = vmatmul.mubr.bf16.gmra.mrb[0].mxu0 %v314
      %v350 = vpop.f32.mrb[0].mxu0
      %v351 = vadd.f32 %v310, %v350
      %v352 = vpop.f32.mrb[0].mxu0
      %v353 = vpop.f32.mrb[0].mxu0
      %v354 = vpop.f32.mrb[0].mxu0
      %355 = vdwg.mxu0
      %v356 = vmax.f32 %v351, 0.0
      %s357 = scalar_lea.vmem %s4, 16
      %v358 = vld [vmem:[%s357] sm:$0xf]
      %v359 = vld [vmem:[%s357 + $0x4] sm:$0xf]
      %v360 = vld [vmem:[%s357 + $0x8] sm:$0xf]
      %v361 = vld [vmem:[%s357 + $0xc] sm:$0xf]
      %v362 = vpack.c.bf16 %v356, %v356
      %v363 = vld [vmem:[%s2] sm:$0xff]
      %v364 = vld [vmem:[%s2 + $0x8] sm:$0xff]
      %v365 = vld [vmem:[%s2 + $0x10] sm:$0xff]
      %v366 = vld [vmem:[%s2 + $0x18] sm:$0xff]
      %v371 = vunpack.c.l.b16 %v358
      %v372 = vunpack.c.l.b16 %v359
      %v373 = vunpack.c.l.b16 %v360
      %v374 = vunpack.c.l.b16 %v361
      %v375 = vpack.c.b16 %v372, %v371
      %v376 = vpack.c.b16 %v374, %v373
      %381 = vrot.lane.b32.xlu0 %v363, 123
      %v382 = vpop.permute.xlu0 %381
      %383 = vrot.lane.b32.xlu0 %v364, 123
      %v384 = vpop.permute.xlu0 %383
      %385 = vrot.lane.b32.xlu0 %v365, 123
      %v386 = vpop.permute.xlu0 %385
      %387 = vrot.lane.b32.xlu0 %v366, 123
      %v388 = vpop.permute.xlu0 %387
      %vm393 = vcmask 15360
      %v395 = vsel %vm393, %v375, 0
      %v398 = vsel %vm393, %v376, 0
      %vm400 = vcmask 1040384
      %v402 = vsel %vm400, %v362, 0
      %404 = vmatprep.subr.bf16.mxu0 0
      %405 = vmatpush1.bf16.msra.mxu0 %v402
      %406 = vmatprep.subr.bf16.mxu0 0
      %407 = vmatpush1.bf16.msra.mxu0 0
      %408 = vmatprep.subr.bf16.mxu0 0
      %409 = vmatpush1.bf16.msra.mxu0 0
      %410 = vmatprep.subr.bf16.mxu0 0
      %411 = vmatpush1.bf16.msra.mxu0 0
      %412 = vmatprep.subr.bf16.mxu0 0
      %413 = vmatpush1.bf16.msra.mxu0 0
      %414 = vmatprep.subr.bf16.mxu0 0
      %415 = vmatpush1.bf16.msra.mxu0 0
      %416 = vmatprep.subr.bf16.mxu0 0
      %417 = vmatpush1.bf16.msra.mxu0 0
      %418 = vmatprep.subr.bf16.mxu0 0
      %419 = vmatpush1.bf16.msra.mxu0 0
      %420 = vmatprep.subr.bf16.mxu0 0
      %421 = vmatpush1.bf16.msra.mxu0 0
      %422 = vmatprep.subr.bf16.mxu0 0
      %423 = vmatpush1.bf16.msra.mxu0 0
      %424 = vmatprep.subr.bf16.mxu0 0
      %425 = vmatpush1.bf16.msra.mxu0 0
      %426 = vmatprep.subr.bf16.mxu0 0
      %427 = vmatpush1.bf16.msra.mxu0 0
      %428 = vmatprep.subr.bf16.mxu0 0
      %429 = vmatpush1.bf16.msra.mxu0 0
      %430 = vmatprep.subr.bf16.mxu0 0
      %431 = vmatpush1.bf16.msra.mxu0 0
      %432 = vmatprep.subr.bf16.mxu0 0
      %433 = vmatpush1.bf16.msra.mxu0 0
      %434 = vmatprep.subr.bf16.mxu0 0
      %435 = vmatpush1.bf16.msra.mxu0 0
      %436 = vmatprep.mubr.bf16.mxu0 0
      %437 = vmatmul.mubr.bf16.gmra.mrb[0].mxu0 %v395
      %v438 = vpop.f32.mrb[0].mxu0
      %v439 = vadd.f32 %v382, %v438
      %v440 = vpop.f32.mrb[0].mxu0
      %v441 = vpop.f32.mrb[0].mxu0
      %v442 = vadd.f32 %v384, %v441
      %v443 = vpop.f32.mrb[0].mxu0
      %444 = vmatprep.mubr.bf16.mxu0 0
      %445 = vmatmul.mubr.bf16.gmra.mrb[0].mxu0 %v398
      %v446 = vpop.f32.mrb[0].mxu0
      %v447 = vadd.f32 %v386, %v446
      %v448 = vpop.f32.mrb[0].mxu0
      %v449 = vpop.f32.mrb[0].mxu0
      %v450 = vadd.f32 %v388, %v449
      %v451 = vpop.f32.mrb[0].mxu0
      %452 = vdwg.mxu0
      %v453 = vxor.u32 %v439, 2147483648
      %v454 = vxor.u32 %v442, 2147483648
      %v455 = vxor.u32 %v447, 2147483648
      %v456 = vxor.u32 %v450, 2147483648
      %v457 = vmul.f32 %v453, 1.442695
      %v458 = vpow.pop %v457
      %v459 = vmul.f32 %v454, 1.442695
      %v460 = vpow.pop %v459
      %v461 = vmul.f32 %v455, 1.442695
      %v462 = vpow.pop %v461
      %v463 = vmul.f32 %v456, 1.442695
      %v464 = vpow.pop %v463
      %v465 = vadd.f32 %v458, 1.0
      %v466 = vadd.f32 %v460, 1.0
      %v467 = vadd.f32 %v462, 1.0
      %v468 = vadd.f32 %v464, 1.0
      %v469 = vrcp.pop %v465
      %v470 = vmul.f32 1.0, %v469
      %v471 = vrcp.pop %v466
      %v472 = vmul.f32 1.0, %v471
      %v473 = vrcp.pop %v467
      %v474 = vmul.f32 1.0, %v473
      %v475 = vrcp.pop %v468
      %v476 = vmul.f32 1.0, %v475
      %478 = vset.pattern.permute.xlu0 0
      %479 = vperm.xlu0 %478, %v470
      %v480 = vpop.permute.xlu0 %479
      %483 = vset.pattern.permute.xlu0 0
      %484 = vperm.xlu0 %483, %v472
      %v485 = vpop.permute.xlu0 %484
      %488 = vset.pattern.permute.xlu0 0
      %489 = vperm.xlu0 %488, %v474
      %v490 = vpop.permute.xlu0 %489
      %493 = vset.pattern.permute.xlu0 0
      %494 = vperm.xlu0 %493, %v476
      %v495 = vpop.permute.xlu0 %494
      %v497 = vmul.f32 %v282, %v480
      %v498 = vmul.f32 %v283, %v485
      %v499 = vmul.f32 %v284, %v490
      %v500 = vmul.f32 %v285, %v495
      %501 = vst.msk [vmem:[%s224] sm:$0xff] %vm286, %v497
      %502 = vst.msk [vmem:[%s224 + $0x8] sm:$0xff] %vm286, %v498
      %503 = vst.msk [vmem:[%s224 + $0x10] sm:$0xff] %vm286, %v499
      %504 = vst.msk [vmem:[%s224 + $0x18] sm:$0xff] %vm286, %v500
      %p505 = scmp.lt.s32.totalorder %s16, 1
      %s506 = scalar_select %p505, %s16, 1
      %s507 = smul.addr %s506, 4
      %s508 = smul.addr %s507, 8
      %s509 = scalar_lea.vmem %s5, %s508
      // Predicated region
      $region41: #{side_se_conv2d.5} parent=39 // pred_check
        %p510 = pneg %p144
      $region42: #{side_se_conv2d.5} parent=39 // pred_check_branch
        %512 = sbr.rel (%p510) target = $region44
      $region43: #{side_se_conv2d.5} parent=39 // pred_region
        _
      $region44: #{side_se_conv2d.5} parent=39 // pred_fallthru
        _
    $region40: #{side_se_conv2d.5} parent=5 // pred_fallthru
      _
    %p513 = scmp.le.s32.totalorder 2, %s11
    // Predicated region
    $region45: #{side_se_conv2d.5} parent=5 // pred_check
      %p514 = pneg %p513
    $region46: #{side_se_conv2d.5} parent=5 // pred_check_branch
      %516 = sbr.rel (%p514) target = $region48
    $region47: #{side_se_conv2d.5} parent=5 // pred_region
      %s517 = ssub.s32 %s11, 2
      // Predicated region
      $region49: #{side_se_conv2d.5} parent=47 // pred_check
        %p518 = pneg %p150
      $region50: #{side_se_conv2d.5} parent=47 // pred_check_branch
        %520 = sbr.rel (%p518) target = $region52
      $region51: #{side_se_conv2d.5} parent=47 // pred_region
        %p521 = scmp.lt.s32.totalorder %s17, 1
        %s522 = scalar_select %p521, %s17, 1
        %s523 = smul.addr %s522, 4
        %s524 = smul.addr %s523, 8
        %s525 = scalar_lea.vmem %s5, %s524
      $region52: #{side_se_conv2d.5} parent=47 // pred_fallthru
        _
    $region48: #{side_se_conv2d.5} parent=5 // pred_fallthru
      _
  $region6: #{side_se_conv2d.5} parent=0 // loop_footer
    %s15 = sadd.s32 1, %s11
  $region7: #{side_se_conv2d.5} parent=0 // loop_footer_branch
    %10 = sbr.rel target = $region3
  $region8: #{side_se_conv2d.5} parent=0 // loop_exit
    _

// kernel: side_se_conv2d.3
$region0: #{side_se_conv2d.3}
  #allocation0 [shape = 'u32[]', space=smem, size = 0x4, offset = 0x4, fixed_abs, tag = 'smem constant byte address 0x4 - core index']
  #allocation1 [shape = 'u32[144,128]{1,0:T(1,128)}', space=vmem, size = 0x12000, scoped, tag = 'internal scratch']
  %s0 = inlined_call_operand.vmem [shape: bf16[2,72,12], index: 0, kind: input, shape index: {}]
  %s1 = inlined_call_operand.vmem [shape: bf16[2,64,12], index: 1, kind: input, shape index: {}]
  %s2 = inlined_call_operand.vmem [shape: bf16[3,32,12], index: 2, kind: input, shape index: {}]
  %s3 = inlined_call_operand.vmem [shape: f32[32,8], index: 3, kind: input, shape index: {}]
  %s4 = inlined_call_operand.vmem [shape: bf16[2,32,64], index: 4, kind: output, shape index: {0}]
  %s5 = inlined_call_operand.vmem [shape: f32[2,32,2], index: 5, kind: output, shape index: {1}]
  %6 = xla_tuple %s4, %s5
  %s7 = sld [smem:[#allocation0]]
  $region57: #{side_se_conv2d.3} parent=0
    _
  %s9 = ssub.s32 1, %s7
  %s10 = scalar_select 0, %s9, %s7
  loop: start=0, step=1, limit=4
  $region2: #{side_se_conv2d.3} parent=0 // loop_pre_header
    _
  $region3: #{side_se_conv2d.3} parent=0 // loop_header
    %s12 = sphi 0, %s16
    %p13 = scmp.ge.s32.totalorder %s12, 4
    %s22 = sphi 0, %s24
    %s25 = sphi 0, %s22
    %s26 = sphi 0, %s25
    %s42 = sphi 0, %s26
    %s48 = sphi 0, %s50
    %s51 = sphi 0, %s48
    %s52 = sphi 0, %s51
    %s68 = sphi 0, %s52
    %s72 = sphi 0, %s72
    %s74 = sphi 0, %s72
    %s75 = sphi 0, %s74
    %s89 = sphi 0, %s75
    %s93 = sphi 0, %s93
    %s95 = sphi 0, %s93
    %s96 = sphi 0, %s95
    %s110 = sphi 0, %s96
    %s116 = sphi 0, %s118
    %s119 = sphi 0, %s116
    %s120 = sphi 0, %s119
    %s136 = sphi 0, %s120
    %s142 = sphi 0, %s144
    %s145 = sphi 0, %s142
    %s146 = sphi 0, %s145
    %s162 = sphi 0, %s146
  $region4: #{side_se_conv2d.3} parent=0 // loop_header_branch
    %15 = sbr.rel (%p13) target = $region8
  $region5: #{side_se_conv2d.3} parent=0 // loop_body
    %s17 = ssub.s32 %s12, 1
    %s18 = ssub.s32 %s12, 2
    %s19 = sadd.s32 %s12, 1
    %s20 = ssub.s32 %s12, %s19
    %p21 = scmp.eq.s32.totalorder %s20, 0
    %s23 = sadd.s32 %s22, 1
    %s24 = scalar_select %p21, %s22, %s23
    %p27 = pneg %p21
    %p28 = scmp.eq.s32.totalorder %s12, 1
    %p29 = por %p27, %p28
    %p30 = scmp.ne.s32.totalorder %s22, %s25
    %p31 = scmp.eq.s32.totalorder %s12, 0
    %p32 = por %p30, %p31
    %p33 = scmp.ne.s32.totalorder %s22, %s25
    %p34 = scmp.eq.s32.totalorder %s17, 1
    %p35 = por %p33, %p34
    %p36 = scmp.ne.s32.totalorder %s25, %s26
    %p37 = scmp.eq.s32.totalorder %s17, 0
    %p38 = por %p36, %p37
    %p39 = scmp.ne.s32.totalorder %s25, %s26
    %p40 = scmp.eq.s32.totalorder %s18, 1
    %p41 = por %p39, %p40
    %p43 = scmp.ne.s32.totalorder %s26, %s42
    %p44 = scmp.eq.s32.totalorder %s18, 0
    %p45 = por %p43, %p44
    %s46 = ssub.s32 %s12, %s19
    %p47 = scmp.eq.s32.totalorder %s46, 0
    %s49 = sadd.s32 %s48, 1
    %s50 = scalar_select %p47, %s48, %s49
    %p53 = pneg %p47
    %p54 = scmp.eq.s32.totalorder %s12, 1
    %p55 = por %p53, %p54
    %p56 = scmp.ne.s32.totalorder %s48, %s51
    %p57 = scmp.eq.s32.totalorder %s12, 0
    %p58 = por %p56, %p57
    %p59 = scmp.ne.s32.totalorder %s48, %s51
    %p60 = scmp.eq.s32.totalorder %s17, 1
    %p61 = por %p59, %p60
    %p62 = scmp.ne.s32.totalorder %s51, %s52
    %p63 = scmp.eq.s32.totalorder %s17, 0
    %p64 = por %p62, %p63
    %p65 = scmp.ne.s32.totalorder %s51, %s52
    %p66 = scmp.eq.s32.totalorder %s18, 1
    %p67 = por %p65, %p66
    %p69 = scmp.ne.s32.totalorder %s52, %s68
    %p70 = scmp.eq.s32.totalorder %s18, 0
    %p71 = por %p69, %p70
    %s73 = sadd.s32 %s72, 1
    %p76 = scmp.eq.s32.totalorder %s12, 1
    %p77 = scmp.ne.s32.totalorder %s72, %s74
    %p78 = scmp.eq.s32.totalorder %s12, 0
    %p79 = por %p77, %p78
    %p80 = scmp.ne.s32.totalorder %s72, %s74
    %p81 = scmp.eq.s32.totalorder %s17, 1
    %p82 = por %p80, %p81
    %p83 = scmp.ne.s32.totalorder %s74, %s75
    %p84 = scmp.eq.s32.totalorder %s17, 0
    %p85 = por %p83, %p84
    %p86 = scmp.ne.s32.totalorder %s74, %s75
    %p87 = scmp.eq.s32.totalorder %s18, 1
    %p88 = por %p86, %p87
    %p90 = scmp.ne.s32.totalorder %s75, %s89
    %p91 = scmp.eq.s32.totalorder %s18, 0
    %p92 = por %p90, %p91
    %s94 = sadd.s32 %s93, 1
    %p97 = scmp.eq.s32.totalorder %s12, 1
    %p98 = scmp.ne.s32.totalorder %s93, %s95
    %p99 = scmp.eq.s32.totalorder %s12, 0
    %p100 = por %p98, %p99
    %p101 = scmp.ne.s32.totalorder %s93, %s95
    %p102 = scmp.eq.s32.totalorder %s17, 1
    %p103 = por %p101, %p102
    %p104 = scmp.ne.s32.totalorder %s95, %s96
    %p105 = scmp.eq.s32.totalorder %s17, 0
    %p106 = por %p104, %p105
    %p107 = scmp.ne.s32.totalorder %s95, %s96
    %p108 = scmp.eq.s32.totalorder %s18, 1
    %p109 = por %p107, %p108
    %p111 = scmp.ne.s32.totalorder %s96, %s110
    %p112 = scmp.eq.s32.totalorder %s18, 0
    %p113 = por %p111, %p112
    %s114 = ssub.s32 %s12, %s19
    %p115 = scmp.eq.s32.totalorder %s114, 0
    %s117 = sadd.s32 %s116, 1
    %s118 = scalar_select %p115, %s116, %s117
    %p121 = pneg %p115
    %p122 = scmp.eq.s32.totalorder %s12, 1
    %p123 = por %p121, %p122
    %p124 = scmp.ne.s32.totalorder %s116, %s119
    %p125 = scmp.eq.s32.totalorder %s12, 0
    %p126 = por %p124, %p125
    %p127 = scmp.ne.s32.totalorder %s116, %s119
    %p128 = scmp.eq.s32.totalorder %s17, 1
    %p129 = por %p127, %p128
    %p130 = scmp.ne.s32.totalorder %s119, %s120
    %p131 = scmp.eq.s32.totalorder %s17, 0
    %p132 = por %p130, %p131
    %p133 = scmp.ne.s32.totalorder %s119, %s120
    %p134 = scmp.eq.s32.totalorder %s18, 1
    %p135 = por %p133, %p134
    %p137 = scmp.ne.s32.totalorder %s120, %s136
    %p138 = scmp.eq.s32.totalorder %s18, 0
    %p139 = por %p137, %p138
    %s140 = ssub.s32 %s12, %s19
    %p141 = scmp.eq.s32.totalorder %s140, 0
    %s143 = sadd.s32 %s142, 1
    %s144 = scalar_select %p141, %s142, %s143
    %p147 = pneg %p141
    %p148 = scmp.eq.s32.totalorder %s12, 1
    %p149 = por %p147, %p148
    %p150 = scmp.ne.s32.totalorder %s142, %s145
    %p151 = scmp.eq.s32.totalorder %s12, 0
    %p152 = por %p150, %p151
    %p153 = scmp.ne.s32.totalorder %s142, %s145
    %p154 = scmp.eq.s32.totalorder %s17, 1
    %p155 = por %p153, %p154
    %p156 = scmp.ne.s32.totalorder %s145, %s146
    %p157 = scmp.eq.s32.totalorder %s17, 0
    %p158 = por %p156, %p157
    %p159 = scmp.ne.s32.totalorder %s145, %s146
    %p160 = scmp.eq.s32.totalorder %s18, 1
    %p161 = por %p159, %p160
    %p163 = scmp.ne.s32.totalorder %s146, %s162
    %p164 = scmp.eq.s32.totalorder %s18, 0
    %p165 = por %p163, %p164
    %p166 = scmp.le.s32.totalorder 1, %s12
    %p167 = scmp.lt.s32.totalorder %s12, 3
    %p168 = pnand %p166, %p167
    %p169 = pneg %p168
    // Predicated region
    $region9: #{side_se_conv2d.3} parent=5 // pred_check
      _
    $region10: #{side_se_conv2d.3} parent=5 // pred_check_branch
      %171 = sbr.rel (%p168) target = $region12
    $region11: #{side_se_conv2d.3} parent=5 // pred_region
      %s172 = ssub.s32 %s12, 1
      // Predicated region
      $region13: #{side_se_conv2d.3} parent=11 // pred_check
        %p173 = pneg %p85
      $region14: #{side_se_conv2d.3} parent=11 // pred_check_branch
        %175 = sbr.rel (%p173) target = $region16
      $region15: #{side_se_conv2d.3} parent=11 // pred_region
        _
      $region16: #{side_se_conv2d.3} parent=11 // pred_fallthru
        _
      // Predicated region
      $region17: #{side_se_conv2d.3} parent=11 // pred_check
        %p176 = pneg %p106
      $region18: #{side_se_conv2d.3} parent=11 // pred_check_branch
        %178 = sbr.rel (%p176) target = $region20
      $region19: #{side_se_conv2d.3} parent=11 // pred_region
        _
      $region20: #{side_se_conv2d.3} parent=11 // pred_fallthru
        _
    $region12: #{side_se_conv2d.3} parent=5 // pred_fallthru
      _
    %p179 = scmp.lt.s32.totalorder %s12, 2
    // Predicated region
    $region21: #{side_se_conv2d.3} parent=5 // pred_check
      %p180 = pneg %p179
    $region22: #{side_se_conv2d.3} parent=5 // pred_check_branch
      %182 = sbr.rel (%p180) target = $region24
    $region23: #{side_se_conv2d.3} parent=5 // pred_region
      // Predicated region
      $region25: #{side_se_conv2d.3} parent=23 // pred_check
        %p183 = pneg %p32
      $region26: #{side_se_conv2d.3} parent=23 // pred_check_branch
        %185 = sbr.rel (%p183) target = $region28
      $region27: #{side_se_conv2d.3} parent=23 // pred_region
        %p186 = scmp.lt.s32.totalorder %s12, 1
        %s187 = scalar_select %p186, %s12, 1
        %s188 = smul.addr %s187, 9
        %s189 = smul.addr %s188, 4
        %s190 = scalar_lea.vmem %s0, %s189
      $region28: #{side_se_conv2d.3} parent=23 // pred_fallthru
        _
      // Predicated region
      $region29: #{side_se_conv2d.3} parent=23 // pred_check
        %p191 = pneg %p58
      $region30: #{side_se_conv2d.3} parent=23 // pred_check_branch
        %193 = sbr.rel (%p191) target = $region32
      $region31: #{side_se_conv2d.3} parent=23 // pred_region
        %p194 = scmp.lt.s32.totalorder %s12, 1
        %s195 = scalar_select %p194, %s12, 1
        %s196 = smul.addr %s195, 8
        %s197 = smul.addr %s196, 4
        %s198 = scalar_lea.vmem %s1, %s197
      $region32: #{side_se_conv2d.3} parent=23 // pred_fallthru
        _
    $region24: #{side_se_conv2d.3} parent=5 // pred_fallthru
      _
    %p199 = scmp.le.s32.totalorder 1, %s12
    %p200 = scmp.lt.s32.totalorder %s12, 3
    %p201 = pnand %p199, %p200
    %p202 = pneg %p201
    // Predicated region
    $region33: #{side_se_conv2d.3} parent=5 // pred_check
      _
    $region34: #{side_se_conv2d.3} parent=5 // pred_check_branch
      %204 = sbr.rel (%p201) target = $region36
    $region35: #{side_se_conv2d.3} parent=5 // pred_region
      %s205 = ssub.s32 %s12, 1
      %p206 = scmp.lt.s32.totalorder %s17, 1
      %s207 = scalar_select %p206, %s17, 1
      %s208 = smul.addr %s207, 9
      %s209 = smul.addr %s208, 4
      %s210 = scalar_lea.vmem %s0, %s209
      %p211 = pneg %p38
      %p212 = pneg %p35
      %p213 = scmp.lt.s32.totalorder %s17, 1
      %s214 = scalar_select %p213, %s17, 1
      %s215 = smul.addr %s214, 8
      %s216 = smul.addr %s215, 4
      %s217 = scalar_lea.vmem %s1, %s216
      %p218 = pneg %p64
      %p219 = pneg %p61
      %p220 = pneg %p85
      %p221 = pneg %p82
      %p222 = pneg %p106
      %p223 = pneg %p103
      %p224 = pneg %p132
      %p225 = pneg %p129
      %p226 = scmp.lt.s32.totalorder %s17, 1
      %s227 = scalar_select %p226, %s17, 1
      %s228 = smul.addr %s227, 4
      %s229 = smul.addr %s228, 4
      %s230 = scalar_lea.vmem %s4, %s229
      %p231 = pneg %p158
      %p232 = pneg %p155
      %p233 = scmp.lt.s32.totalorder %s17, 1
      %s234 = scalar_select %p233, %s17, 1
      %s235 = smul.addr %s234, 4
      %s236 = smul.addr %s235, 8
      %s237 = scalar_lea.vmem %s5, %s236
      %p238 = scmp.lt.s32.totalorder %s17, 1
      %s239 = scalar_select %p238, %s17, 1
      %s240 = smul.addr %s239, 9
      %s241 = smul.addr %s240, 4
      %s242 = scalar_lea.vmem %s0, %s241
      %p243 = scmp.lt.s32.totalorder %s17, 1
      %s244 = scalar_select %p243, %s17, 1
      %s245 = smul.addr %s244, 8
      %s246 = smul.addr %s245, 4
      %s247 = scalar_lea.vmem %s1, %s246
      %p248 = scmp.lt.s32.totalorder %s17, 1
      %s249 = scalar_select %p248, %s17, 1
      %s250 = smul.addr %s249, 4
      %s251 = smul.addr %s250, 4
      %s252 = scalar_lea.vmem %s4, %s251
      %p253 = scmp.lt.s32.totalorder %s17, 1
      %s254 = scalar_select %p253, %s17, 1
      %s255 = smul.addr %s254, 4
      %s256 = smul.addr %s255, 8
      %s257 = scalar_lea.vmem %s5, %s256
      %v259 = vld [vmem:[%s242] sm:$0xf]
      %v260 = vld [vmem:[%s242 + $0x4] sm:$0xf]
      %v261 = vld [vmem:[%s242 + $0x8] sm:$0xf]
      %v262 = vld [vmem:[%s242 + $0xc] sm:$0xf]
      %v263 = vld [vmem:[%s242 + $0x10] sm:$0xf]
      %v264 = vld [vmem:[%s242 + $0x14] sm:$0xf]
      %v265 = vld [vmem:[%s242 + $0x18] sm:$0xf]
      %v266 = vld [vmem:[%s242 + $0x1c] sm:$0xf]
      %v267 = vld [vmem:[%s242 + $0x20] sm:$0xf]
      %v268 = vld [vmem:[%s247] sm:$0xf]
      %v269 = vld [vmem:[%s247 + $0x4] sm:$0xf]
      %v270 = vld [vmem:[%s247 + $0x8] sm:$0xf]
      %v271 = vld [vmem:[%s247 + $0xc] sm:$0xf]
      %v272 = vld [vmem:[%s247 + $0x10] sm:$0xf]
      %v273 = vld [vmem:[%s247 + $0x14] sm:$0xf]
      %v274 = vld [vmem:[%s247 + $0x18] sm:$0xf]
      %v275 = vld [vmem:[%s247 + $0x1c] sm:$0xf]
      %v276 = vld [vmem:[%s2] sm:$0xf]
      %v277 = vld [vmem:[%s2 + $0x4] sm:$0xf]
      %v278 = vld [vmem:[%s2 + $0x8] sm:$0xf]
      %v279 = vld [vmem:[%s2 + $0xc] sm:$0xf]
      %s280 = scalar_lea.vmem %s2, 16
      %v281 = vld [vmem:[%s280] sm:$0xf]
      %v282 = vld [vmem:[%s280 + $0x4] sm:$0xf]
      %v283 = vld [vmem:[%s280 + $0x8] sm:$0xf]
      %v284 = vld [vmem:[%s280 + $0xc] sm:$0xf]
      %v289 = vunpack.c.l.b16 %v281
      %v290 = vunpack.c.l.b16 %v282
      %v291 = vunpack.c.l.b16 %v283
      %v292 = vunpack.c.l.b16 %v284
      %v293 = vpack.c.b16 %v290, %v289
      %v294 = vpack.c.b16 %v292, %v291
      %v303 = vunpack.c.l.b16 %v268
      %v304 = vunpack.c.l.b16 %v269
      %v305 = vunpack.c.l.b16 %v270
      %v306 = vunpack.c.l.b16 %v271
      %v307 = vunpack.c.l.b16 %v272
      %v308 = vunpack.c.l.b16 %v273
      %v309 = vunpack.c.l.b16 %v274
      %v310 = vunpack.c.l.b16 %v275
      %v311 = vpack.c.b16 %v304, %v303
      %v312 = vpack.c.b16 %v306, %v305
      %v313 = vpack.c.b16 %v308, %v307
      %v314 = vpack.c.b16 %v310, %v309
      %vm315 = vcmask 97280
      %v317 = vsel %vm315, %v293, 0
      %v320 = vsel %vm315, %v294, 0
      %v323 = vsel %vm315, %v311, 0
      %v326 = vsel %vm315, %v312, 0
      %v329 = vsel %vm315, %v313, 0
      %v332 = vsel %vm315, %v314, 0
      %334 = vmatprep.subr.bf16.mxu0 0
      %335 = vmatpush1.bf16.xpose.msra.mxu0 %v323
      %336 = vmatprep.subr.bf16.mxu0 0
      %337 = vmatpush1.bf16.xpose.msra.mxu0 %v326
      %338 = vmatprep.subr.bf16.mxu0 0
      %339 = vmatpush1.bf16.xpose.msra.mxu0 %v329
      %340 = vmatprep.subr.bf16.mxu0 0
      %341 = vmatpush1.bf16.xpose.msra.mxu0 %v332
      %342 = vmatprep.subr.bf16.mxu0 0
      %343 = vmatpush1.bf16.xpose.msra.mxu0 0
      %344 = vmatprep.subr.bf16.mxu0 0
      %345 = vmatpush1.bf16.xpose.msra.mxu0 0
      %346 = vmatprep.subr.bf16.mxu0 0
      %347 = vmatpush1.bf16.xpose.msra.mxu0 0
      %348 = vmatprep.subr.bf16.mxu0 0
      %349 = vmatpush1.bf16.xpose.msra.mxu0 0
      %350 = vmatprep.subr.bf16.mxu0 0
      %351 = vmatpush1.bf16.xpose.msra.mxu0 0
      %352 = vmatprep.subr.bf16.mxu0 0
      %353 = vmatpush1.bf16.xpose.msra.mxu0 0
      %354 = vmatprep.subr.bf16.mxu0 0
      %355 = vmatpush1.bf16.xpose.msra.mxu0 0
      %356 = vmatprep.subr.bf16.mxu0 0
      %357 = vmatpush1.bf16.xpose.msra.mxu0 0
      %358 = vmatprep.subr.bf16.mxu0 0
      %359 = vmatpush1.bf16.xpose.msra.mxu0 0
      %360 = vmatprep.subr.bf16.mxu0 0
      %361 = vmatpush1.bf16.xpose.msra.mxu0 0
      %362 = vmatprep.subr.bf16.mxu0 0
      %363 = vmatpush1.bf16.xpose.msra.mxu0 0
      %364 = vmatprep.subr.bf16.mxu0 0
      %365 = vmatpush1.bf16.xpose.msra.mxu0 0
      %366 = vmatprep.mubr.bf16.mxu0 0
      %367 = vmatmul.mubr.bf16.gmra.mrb[0].mxu0 %v317
      %v368 = vpop.f32.mrb[0].mxu0
      %v369 = vadd.f32 0.0, %v368
      %v370 = vpop.f32.mrb[0].mxu0
      %v371 = vpop.f32.mrb[0].mxu0
      %v372 = vadd.f32 0.0, %v371
      %v373 = vpop.f32.mrb[0].mxu0
      %374 = vmatprep.mubr.bf16.mxu0 0
      %375 = vmatmul.mubr.bf16.gmra.mrb[0].mxu0 %v320
      %v376 = vpop.f32.mrb[0].mxu0
      %v377 = vadd.f32 0.0, %v376
      %v378 = vpop.f32.mrb[0].mxu0
      %v379 = vpop.f32.mrb[0].mxu0
      %v380 = vadd.f32 0.0, %v379
      %v381 = vpop.f32.mrb[0].mxu0
      %382 = vdwg.mxu0
      %v387 = vunpack.c.l.b16 %v276
      %v388 = vunpack.c.l.b16 %v277
      %v389 = vunpack.c.l.b16 %v278
      %v390 = vunpack.c.l.b16 %v279
      %v391 = vpack.c.b16 %v388, %v387
      %v392 = vpack.c.b16 %v390, %v389
      %v401 = vunpack.c.l.b16 %v259
      %v402 = vunpack.c.l.b16 %v260
      %v403 = vunpack.c.l.b16 %v261
      %v404 = vunpack.c.l.b16 %v262
      %v405 = vunpack.c.l.b16 %v263
      %v406 = vunpack.c.l.b16 %v264
      %v407 = vunpack.c.l.b16 %v265
      %v408 = vunpack.c.l.b16 %v266
      %v409 = vpack.c.b16 %v402, %v401
      %v410 = vpack.c.b16 %v404, %v403
      %v411 = vpack.c.b16 %v406, %v405
      %v412 = vpack.c.b16 %v408, %v407
      %v414 = vsel %vm315, %v391, 0
      %v417 = vsel %vm315, %v392, 0
      %v420 = vsel %vm315, %v409, 0
      %v423 = vsel %vm315, %v410, 0
      %v426 = vsel %vm315, %v411, 0
      %v429 = vsel %vm315, %v412, 0
      %431 = vmatprep.subr.bf16.mxu0 0
      %432 = vmatpush1.bf16.xpose.msra.mxu0 %v420
      %433 = vmatprep.subr.bf16.mxu0 0
      %434 = vmatpush1.bf16.xpose.msra.mxu0 %v423
      %435 = vmatprep.subr.bf16.mxu0 0
      %436 = vmatpush1.bf16.xpose.msra.mxu0 %v426
      %437 = vmatprep.subr.bf16.mxu0 0
      %438 = vmatpush1.bf16.xpose.msra.mxu0 %v429
      %439 = vmatprep.subr.bf16.mxu0 0
      %440 = vmatpush1.bf16.xpose.msra.mxu0 0
      %441 = vmatprep.subr.bf16.mxu0 0
      %442 = vmatpush1.bf16.xpose.msra.mxu0 0
      %443 = vmatprep.subr.bf16.mxu0 0
      %444 = vmatpush1.bf16.xpose.msra.mxu0 0
      %445 = vmatprep.subr.bf16.mxu0 0
      %446 = vmatpush1.bf16.xpose.msra.mxu0 0
      %447 = vmatprep.subr.bf16.mxu0 0
      %448 = vmatpush1.bf16.xpose.msra.mxu0 0
      %449 = vmatprep.subr.bf16.mxu0 0
      %450 = vmatpush1.bf16.xpose.msra.mxu0 0
      %451 = vmatprep.subr.bf16.mxu0 0
      %452 = vmatpush1.bf16.xpose.msra.mxu0 0
      %453 = vmatprep.subr.bf16.mxu0 0
      %454 = vmatpush1.bf16.xpose.msra.mxu0 0
      %455 = vmatprep.subr.bf16.mxu0 0
      %456 = vmatpush1.bf16.xpose.msra.mxu0 0
      %457 = vmatprep.subr.bf16.mxu0 0
      %458 = vmatpush1.bf16.xpose.msra.mxu0 0
      %459 = vmatprep.subr.bf16.mxu0 0
      %460 = vmatpush1.bf16.xpose.msra.mxu0 0
      %461 = vmatprep.subr.bf16.mxu0 0
      %462 = vmatpush1.bf16.xpose.msra.mxu0 0
      %463 = vmatprep.mubr.bf16.mxu0 0
      %464 = vmatmul.mubr.bf16.gmra.mrb[0].mxu0 %v414
      %v465 = vpop.f32.mrb[0].mxu0
      %v466 = vadd.f32 %v369, %v465
      %v467 = vpop.f32.mrb[0].mxu0
      %v468 = vpop.f32.mrb[0].mxu0
      %v469 = vadd.f32 %v372, %v468
      %v470 = vpop.f32.mrb[0].mxu0
      %471 = vmatprep.mubr.bf16.mxu0 0
      %472 = vmatmul.mubr.bf16.gmra.mrb[0].mxu0 %v417
      %v473 = vpop.f32.mrb[0].mxu0
      %v474 = vadd.f32 %v377, %v473
      %v475 = vpop.f32.mrb[0].mxu0
      %v476 = vpop.f32.mrb[0].mxu0
      %v477 = vadd.f32 %v380, %v476
      %v478 = vpop.f32.mrb[0].mxu0
      %479 = vdwg.mxu0
      %s480 = scalar_lea.vmem %s2, 32
      %v481 = vld [vmem:[%s480] sm:$0xf]
      %v482 = vld [vmem:[%s480 + $0x4] sm:$0xf]
      %v483 = vld [vmem:[%s480 + $0x8] sm:$0xf]
      %v484 = vld [vmem:[%s480 + $0xc] sm:$0xf]
      %v489 = vunpack.c.l.b16 %v481
      %v490 = vunpack.c.l.b16 %v482
      %v491 = vunpack.c.l.b16 %v483
      %v492 = vunpack.c.l.b16 %v484
      %v493 = vpack.c.b16 %v490, %v489
      %v494 = vpack.c.b16 %v492, %v491
      %v496 = vunpack.c.l.b16 %v267
      %v497 = vpack.c.b16 %v403, %v402
      %v498 = vpack.c.b16 %v405, %v404
      %v499 = vpack.c.b16 %v407, %v406
      %v500 = vpack.c.b16 %v496, %v408
      %v502 = vsel %vm315, %v493, 0
      %v505 = vsel %vm315, %v494, 0
      %v508 = vsel %vm315, %v497, 0
      %v511 = vsel %vm315, %v498, 0
      %v514 = vsel %vm315, %v499, 0
      %v517 = vsel %vm315, %v500, 0
      %519 = vmatprep.subr.bf16.mxu0 0
      %520 = vmatpush1.bf16.xpose.msra.mxu0 %v508
      %521 = vmatprep.subr.bf16.mxu0 0
      %522 = vmatpush1.bf16.xpose.msra.mxu0 %v511
      %523 = vmatprep.subr.bf16.mxu0 0
      %524 = vmatpush1.bf16.xpose.msra.mxu0 %v514
      %525 = vmatprep.subr.bf16.mxu0 0
      %526 = vmatpush1.bf16.xpose.msra.mxu0 %v517
      %527 = vmatprep.subr.bf16.mxu0 0
      %528 = vmatpush1.bf16.xpose.msra.mxu0 0
      %529 = vmatprep.subr.bf16.mxu0 0
      %530 = vmatpush1.bf16.xpose.msra.mxu0 0
      %531 = vmatprep.subr.bf16.mxu0 0
      %532 = vmatpush1.bf16.xpose.msra.mxu0 0
      %533 = vmatprep.subr.bf16.mxu0 0
      %534 = vmatpush1.bf16.xpose.msra.mxu0 0
      %535 = vmatprep.subr.bf16.mxu0 0
      %536 = vmatpush1.bf16.xpose.msra.mxu0 0
      %537 = vmatprep.subr.bf16.mxu0 0
      %538 = vmatpush1.bf16.xpose.msra.mxu0 0
      %539 = vmatprep.subr.bf16.mxu0 0
      %540 = vmatpush1.bf16.xpose.msra.mxu0 0
      %541 = vmatprep.subr.bf16.mxu0 0
      %542 = vmatpush1.bf16.xpose.msra.mxu0 0
      %543 = vmatprep.subr.bf16.mxu0 0
      %544 = vmatpush1.bf16.xpose.msra.mxu0 0
      %545 = vmatprep.subr.bf16.mxu0 0
      %546 = vmatpush1.bf16.xpose.msra.mxu0 0
      %547 = vmatprep.subr.bf16.mxu0 0
      %548 = vmatpush1.bf16.xpose.msra.mxu0 0
      %549 = vmatprep.subr.bf16.mxu0 0
      %550 = vmatpush1.bf16.xpose.msra.mxu0 0
      %551 = vmatprep.mubr.bf16.mxu0 0
      %552 = vmatmul.mubr.bf16.gmra.mrb[0].mxu0 %v502
      %v553 = vpop.f32.mrb[0].mxu0
      %v554 = vadd.f32 0.0, %v553
      %v555 = vpop.f32.mrb[0].mxu0
      %v556 = vpop.f32.mrb[0].mxu0
      %v557 = vadd.f32 0.0, %v556
      %v558 = vpop.f32.mrb[0].mxu0
      %559 = vmatprep.mubr.bf16.mxu0 0
      %560 = vmatmul.mubr.bf16.gmra.mrb[0].mxu0 %v505
      %v561 = vpop.f32.mrb[0].mxu0
      %v562 = vadd.f32 0.0, %v561
      %v563 = vpop.f32.mrb[0].mxu0
      %v564 = vpop.f32.mrb[0].mxu0
      %v565 = vadd.f32 0.0, %v564
      %v566 = vpop.f32.mrb[0].mxu0
      %567 = vdwg.mxu0
      %v568 = vadd.f32 %v466, %v554
      %v569 = vadd.f32 %v469, %v557
      %v570 = vadd.f32 %v474, %v562
      %v571 = vadd.f32 %v477, %v565
      %v572 = vld [vmem:[%s3] sm:$0xff]
      %v573 = vld [vmem:[%s3 + $0x8] sm:$0xff]
      %v574 = vld [vmem:[%s3 + $0x10] sm:$0xff]
      %v575 = vld [vmem:[%s3 + $0x18] sm:$0xff]
      %577 = vset.pattern.permute.xlu0 0
      %578 = vperm.xlu0 %577, %v572
      %v579 = vpop.permute.xlu0 %578
      %582 = vset.pattern.permute.xlu0 0
      %583 = vperm.xlu0 %582, %v573
      %v584 = vpop.permute.xlu0 %583
      %587 = vset.pattern.permute.xlu0 0
      %588 = vperm.xlu0 %587, %v574
      %v589 = vpop.permute.xlu0 %588
      %592 = vset.pattern.permute.xlu0 0
      %593 = vperm.xlu0 %592, %v575
      %v594 = vpop.permute.xlu0 %593
      %v596 = vadd.f32 %v568, %v579
      %v597 = vadd.f32 %v569, %v584
      %v598 = vadd.f32 %v570, %v589
      %v599 = vadd.f32 %v571, %v594
      %v600 = vpack.c.bf16 %v597, %v596
      %v601 = vpack.c.bf16 %v599, %v598
      %v604 = vunpack.c.l.b16 %v600
      %v605 = vunpack.c.h.b16 %v600
      %v606 = vunpack.c.l.b16 %v601
      %v607 = vunpack.c.h.b16 %v601
      %v608 = vpack.c.b16 %v604, %v604
      %v609 = vpack.c.b16 %v605, %v605
      %v610 = vpack.c.b16 %v606, %v606
      %v611 = vpack.c.b16 %v607, %v607
      %vm616 = vcmask 519168
      %617 = vst.msk [vmem:[%s252] sm:$0xf] %vm616, %v608
      %618 = vst.msk [vmem:[%s252 + $0x4] sm:$0xf] %vm616, %v609
      %619 = vst.msk [vmem:[%s252 + $0x8] sm:$0xf] %vm616, %v610
      %620 = vst.msk [vmem:[%s252 + $0xc] sm:$0xf] %vm616, %v611
      %vm621 = vcmask 523264
      %v622 = vsel %vm621, %v596, 0.0
      %623 = vadd.xlane.f32.xlu0 %v622
      %v624 = vpop.xlane.xlu0 %623
      %v625 = vsel %vm621, %v597, 0.0
      %626 = vadd.xlane.f32.xlu0 %v625
      %v627 = vpop.xlane.xlu0 %626
      %v628 = vsel %vm621, %v598, 0.0
      %629 = vadd.xlane.f32.xlu0 %v628
      %v630 = vpop.xlane.xlu0 %629
      %v631 = vsel %vm621, %v599, 0.0
      %632 = vadd.xlane.f32.xlu0 %v631
      %v633 = vpop.xlane.xlu0 %632
      %vm634 = vcmask 7168
      %635 = vst.msk [vmem:[%s257] sm:$0xff] %vm634, %v624
      %636 = vst.msk [vmem:[%s257 + $0x8] sm:$0xff] %vm634, %v627
      %637 = vst.msk [vmem:[%s257 + $0x10] sm:$0xff] %vm634, %v630
      %638 = vst.msk [vmem:[%s257 + $0x18] sm:$0xff] %vm634, %v633
      %v639 = vmul.f32 %v596, %v596
      %v640 = vmul.f32 %v597, %v597
      %v641 = vmul.f32 %v598, %v598
      %v642 = vmul.f32 %v599, %v599
      %v643 = vsel %vm621, %v639, 0.0
      %644 = vadd.xlane.f32.xlu0 %v643
      %v645 = vpop.xlane.xlu0 %644
      %v646 = vsel %vm621, %v640, 0.0
      %647 = vadd.xlane.f32.xlu0 %v646
      %v648 = vpop.xlane.xlu0 %647
      %v649 = vsel %vm621, %v641, 0.0
      %650 = vadd.xlane.f32.xlu0 %v649
      %v651 = vpop.xlane.xlu0 %650
      %v652 = vsel %vm621, %v642, 0.0
      %653 = vadd.xlane.f32.xlu0 %v652
      %v654 = vpop.xlane.xlu0 %653
      %vm655 = vcmask 15368
      %656 = vst.msk [vmem:[%s257] sm:$0xff] %vm655, %v645
      %657 = vst.msk [vmem:[%s257 + $0x8] sm:$0xff] %vm655, %v648
      %658 = vst.msk [vmem:[%s257 + $0x10] sm:$0xff] %vm655, %v651
      %659 = vst.msk [vmem:[%s257 + $0x18] sm:$0xff] %vm655, %v654
      %p660 = scmp.lt.s32.totalorder %s17, 1
      %s661 = scalar_select %p660, %s17, 1
      %s662 = smul.addr %s661, 4
      %s663 = smul.addr %s662, 4
      %s664 = scalar_lea.vmem %s4, %s663
      %p665 = scmp.lt.s32.totalorder %s17, 1
      %s666 = scalar_select %p665, %s17, 1
      %s667 = smul.addr %s666, 4
      %s668 = smul.addr %s667, 8
      %s669 = scalar_lea.vmem %s5, %s668
      // Predicated region
      $region37: #{side_se_conv2d.3} parent=35 // pred_check
        %p670 = pneg %p129
      $region38: #{side_se_conv2d.3} parent=35 // pred_check_branch
        %672 = sbr.rel (%p670) target = $region40
      $region39: #{side_se_conv2d.3} parent=35 // pred_region
        _
      $region40: #{side_se_conv2d.3} parent=35 // pred_fallthru
        _
      // Predicated region
      $region41: #{side_se_conv2d.3} parent=35 // pred_check
        %p673 = pneg %p155
      $region42: #{side_se_conv2d.3} parent=35 // pred_check_branch
        %675 = sbr.rel (%p673) target = $region44
      $region43: #{side_se_conv2d.3} parent=35 // pred_region
        _
      $region44: #{side_se_conv2d.3} parent=35 // pred_fallthru
        _
    $region36: #{side_se_conv2d.3} parent=5 // pred_fallthru
      _
    %p676 = scmp.le.s32.totalorder 2, %s12
    // Predicated region
    $region45: #{side_se_conv2d.3} parent=5 // pred_check
      %p677 = pneg %p676
    $region46: #{side_se_conv2d.3} parent=5 // pred_check_branch
      %679 = sbr.rel (%p677) target = $region48
    $region47: #{side_se_conv2d.3} parent=5 // pred_region
      %s680 = ssub.s32 %s12, 2
      // Predicated region
      $region49: #{side_se_conv2d.3} parent=47 // pred_check
        %p681 = pneg %p135
      $region50: #{side_se_conv2d.3} parent=47 // pred_check_branch
        %683 = sbr.rel (%p681) target = $region52
      $region51: #{side_se_conv2d.3} parent=47 // pred_region
        %p684 = scmp.lt.s32.totalorder %s18, 1
        %s685 = scalar_select %p684, %s18, 1
        %s686 = smul.addr %s685, 4
        %s687 = smul.addr %s686, 4
        %s688 = scalar_lea.vmem %s4, %s687
      $region52: #{side_se_conv2d.3} parent=47 // pred_fallthru
        _
      // Predicated region
      $region53: #{side_se_conv2d.3} parent=47 // pred_check
        %p689 = pneg %p161
      $region54: #{side_se_conv2d.3} parent=47 // pred_check_branch
        %691 = sbr.rel (%p689) target = $region56
      $region55: #{side_se_conv2d.3} parent=47 // pred_region
        %p692 = scmp.lt.s32.totalorder %s18, 1
        %s693 = scalar_select %p692, %s18, 1
        %s694 = smul.addr %s693, 4
        %s695 = smul.addr %s694, 8
        %s696 = scalar_lea.vmem %s5, %s695
      $region56: #{side_se_conv2d.3} parent=47 // pred_fallthru
        _
    $region48: #{side_se_conv2d.3} parent=5 // pred_fallthru
      _
  $region6: #{side_se_conv2d.3} parent=0 // loop_footer
    %s16 = sadd.s32 1, %s12
  $region7: #{side_se_conv2d.3} parent=0 // loop_footer_branch
    %11 = sbr.rel target = $region3
  $region8: #{side_se_conv2d.3} parent=0 // loop_exit
    _

// kernel: side_se_conv2d.4
$region0: #{side_se_conv2d.4}
  #allocation0 [shape = 'u32[]', space=smem, size = 0x4, offset = 0x4, fixed_abs, tag = 'smem constant byte address 0x4 - core index']
  #allocation1 [shape = 'u32[144,128]{1,0:T(1,128)}', space=vmem, size = 0x12000, scoped, tag = 'internal scratch']
  %s0 = inlined_call_operand.vmem [shape: bf16[2,32,64], index: 0, kind: input, shape index: {}]
  %s1 = inlined_call_operand.vmem [shape: f32[2,32,64], index: 1, kind: input, shape index: {}]
  %s2 = inlined_call_operand.vmem [shape: f32[32,2], index: 2, kind: input, shape index: {}]
  %s3 = inlined_call_operand.vmem [shape: f32[32,8], index: 3, kind: input, shape index: {}]
  %s4 = inlined_call_operand.vmem [shape: bf16[2,2,32], index: 4, kind: input, shape index: {}]
  %s5 = inlined_call_operand.vmem [shape: bf16[2,32,2], index: 5, kind: input, shape index: {}]
  %s6 = inlined_call_operand.vmem [shape: bf16[32,32], index: 6, kind: input, shape index: {}]
  %s7 = inlined_call_operand.vmem [shape: bf16[32,32], index: 7, kind: input, shape index: {}]
  %s8 = inlined_call_operand.vmem [shape: bf16[2,32,64], index: 8, kind: output, shape index: {0}]
  %s9 = inlined_call_operand.vmem [shape: f32[2,32,2], index: 9, kind: output, shape index: {1}]
  %10 = xla_tuple %s8, %s9
  %s11 = sld [smem:[#allocation0]]
  $region73: #{side_se_conv2d.4} parent=0
    _
  %s13 = ssub.s32 1, %s11
  %s14 = scalar_select 0, %s13, %s11
  loop: start=0, step=1, limit=4
  $region2: #{side_se_conv2d.4} parent=0 // loop_pre_header
    _
  $region3: #{side_se_conv2d.4} parent=0 // loop_header
    %s16 = sphi 0, %s20
    %p17 = scmp.ge.s32.totalorder %s16, 4
    %s26 = sphi 0, %s28
    %s29 = sphi 0, %s26
    %s30 = sphi 0, %s29
    %s46 = sphi 0, %s30
    %s52 = sphi 0, %s54
    %s55 = sphi 0, %s52
    %s56 = sphi 0, %s55
    %s72 = sphi 0, %s56
    %s76 = sphi 0, %s76
    %s78 = sphi 0, %s76
    %s79 = sphi 0, %s78
    %s93 = sphi 0, %s79
    %s97 = sphi 0, %s97
    %s99 = sphi 0, %s97
    %s100 = sphi 0, %s99
    %s114 = sphi 0, %s100
    %s118 = sphi 0, %s118
    %s120 = sphi 0, %s118
    %s121 = sphi 0, %s120
    %s135 = sphi 0, %s121
    %s139 = sphi 0, %s139
    %s141 = sphi 0, %s139
    %s142 = sphi 0, %s141
    %s156 = sphi 0, %s142
    %s160 = sphi 0, %s160
    %s162 = sphi 0, %s160
    %s163 = sphi 0, %s162
    %s177 = sphi 0, %s163
    %s181 = sphi 0, %s181
    %s183 = sphi 0, %s181
    %s184 = sphi 0, %s183
    %s198 = sphi 0, %s184
    %s204 = sphi 0, %s206
    %s207 = sphi 0, %s204
    %s208 = sphi 0, %s207
    %s224 = sphi 0, %s208
    %s230 = sphi 0, %s232
    %s233 = sphi 0, %s230
    %s234 = sphi 0, %s233
    %s250 = sphi 0, %s234
  $region4: #{side_se_conv2d.4} parent=0 // loop_header_branch
    %19 = sbr.rel (%p17) target = $region8
  $region5: #{side_se_conv2d.4} parent=0 // loop_body
    %s21 = ssub.s32 %s16, 1
    %s22 = ssub.s32 %s16, 2
    %s23 = sadd.s32 %s16, 1
    %s24 = ssub.s32 %s16, %s23
    %p25 = scmp.eq.s32.totalorder %s24, 0
    %s27 = sadd.s32 %s26, 1
    %s28 = scalar_select %p25, %s26, %s27
    %p31 = pneg %p25
    %p32 = scmp.eq.s32.totalorder %s16, 1
    %p33 = por %p31, %p32
    %p34 = scmp.ne.s32.totalorder %s26, %s29
    %p35 = scmp.eq.s32.totalorder %s16, 0
    %p36 = por %p34, %p35
    %p37 = scmp.ne.s32.totalorder %s26, %s29
    %p38 = scmp.eq.s32.totalorder %s21, 1
    %p39 = por %p37, %p38
    %p40 = scmp.ne.s32.totalorder %s29, %s30
    %p41 = scmp.eq.s32.totalorder %s21, 0
    %p42 = por %p40, %p41
    %p43 = scmp.ne.s32.totalorder %s29, %s30
    %p44 = scmp.eq.s32.totalorder %s22, 1
    %p45 = por %p43, %p44
    %p47 = scmp.ne.s32.totalorder %s30, %s46
    %p48 = scmp.eq.s32.totalorder %s22, 0
    %p49 = por %p47, %p48
    %s50 = ssub.s32 %s16, %s23
    %p51 = scmp.eq.s32.totalorder %s50, 0
    %s53 = sadd.s32 %s52, 1
    %s54 = scalar_select %p51, %s52, %s53
    %p57 = pneg %p51
    %p58 = scmp.eq.s32.totalorder %s16, 1
    %p59 = por %p57, %p58
    %p60 = scmp.ne.s32.totalorder %s52, %s55
    %p61 = scmp.eq.s32.totalorder %s16, 0
    %p62 = por %p60, %p61
    %p63 = scmp.ne.s32.totalorder %s52, %s55
    %p64 = scmp.eq.s32.totalorder %s21, 1
    %p65 = por %p63, %p64
    %p66 = scmp.ne.s32.totalorder %s55, %s56
    %p67 = scmp.eq.s32.totalorder %s21, 0
    %p68 = por %p66, %p67
    %p69 = scmp.ne.s32.totalorder %s55, %s56
    %p70 = scmp.eq.s32.totalorder %s22, 1
    %p71 = por %p69, %p70
    %p73 = scmp.ne.s32.totalorder %s56, %s72
    %p74 = scmp.eq.s32.totalorder %s22, 0
    %p75 = por %p73, %p74
    %s77 = sadd.s32 %s76, 1
    %p80 = scmp.eq.s32.totalorder %s16, 1
    %p81 = scmp.ne.s32.totalorder %s76, %s78
    %p82 = scmp.eq.s32.totalorder %s16, 0
    %p83 = por %p81, %p82
    %p84 = scmp.ne.s32.totalorder %s76, %s78
    %p85 = scmp.eq.s32.totalorder %s21, 1
    %p86 = por %p84, %p85
    %p87 = scmp.ne.s32.totalorder %s78, %s79
    %p88 = scmp.eq.s32.totalorder %s21, 0
    %p89 = por %p87, %p88
    %p90 = scmp.ne.s32.totalorder %s78, %s79
    %p91 = scmp.eq.s32.totalorder %s22, 1
    %p92 = por %p90, %p91
    %p94 = scmp.ne.s32.totalorder %s79, %s93
    %p95 = scmp.eq.s32.totalorder %s22, 0
    %p96 = por %p94, %p95
    %s98 = sadd.s32 %s97, 1
    %p101 = scmp.eq.s32.totalorder %s16, 1
    %p102 = scmp.ne.s32.totalorder %s97, %s99
    %p103 = scmp.eq.s32.totalorder %s16, 0
    %p104 = por %p102, %p103
    %p105 = scmp.ne.s32.totalorder %s97, %s99
    %p106 = scmp.eq.s32.totalorder %s21, 1
    %p107 = por %p105, %p106
    %p108 = scmp.ne.s32.totalorder %s99, %s100
    %p109 = scmp.eq.s32.totalorder %s21, 0
    %p110 = por %p108, %p109
    %p111 = scmp.ne.s32.totalorder %s99, %s100
    %p112 = scmp.eq.s32.totalorder %s22, 1
    %p113 = por %p111, %p112
    %p115 = scmp.ne.s32.totalorder %s100, %s114
    %p116 = scmp.eq.s32.totalorder %s22, 0
    %p117 = por %p115, %p116
    %s119 = sadd.s32 %s118, 1
    %p122 = scmp.eq.s32.totalorder %s16, 1
    %p123 = scmp.ne.s32.totalorder %s118, %s120
    %p124 = scmp.eq.s32.totalorder %s16, 0
    %p125 = por %p123, %p124
    %p126 = scmp.ne.s32.totalorder %s118, %s120
    %p127 = scmp.eq.s32.totalorder %s21, 1
    %p128 = por %p126, %p127
    %p129 = scmp.ne.s32.totalorder %s120, %s121
    %p130 = scmp.eq.s32.totalorder %s21, 0
    %p131 = por %p129, %p130
    %p132 = scmp.ne.s32.totalorder %s120, %s121
    %p133 = scmp.eq.s32.totalorder %s22, 1
    %p134 = por %p132, %p133
    %p136 = scmp.ne.s32.totalorder %s121, %s135
    %p137 = scmp.eq.s32.totalorder %s22, 0
    %p138 = por %p136, %p137
    %s140 = sadd.s32 %s139, 1
    %p143 = scmp.eq.s32.totalorder %s16, 1
    %p144 = scmp.ne.s32.totalorder %s139, %s141
    %p145 = scmp.eq.s32.totalorder %s16, 0
    %p146 = por %p144, %p145
    %p147 = scmp.ne.s32.totalorder %s139, %s141
    %p148 = scmp.eq.s32.totalorder %s21, 1
    %p149 = por %p147, %p148
    %p150 = scmp.ne.s32.totalorder %s141, %s142
    %p151 = scmp.eq.s32.totalorder %s21, 0
    %p152 = por %p150, %p151
    %p153 = scmp.ne.s32.totalorder %s141, %s142
    %p154 = scmp.eq.s32.totalorder %s22, 1
    %p155 = por %p153, %p154
    %p157 = scmp.ne.s32.totalorder %s142, %s156
    %p158 = scmp.eq.s32.totalorder %s22, 0
    %p159 = por %p157, %p158
    %s161 = sadd.s32 %s160, 1
    %p164 = scmp.eq.s32.totalorder %s16, 1
    %p165 = scmp.ne.s32.totalorder %s160, %s162
    %p166 = scmp.eq.s32.totalorder %s16, 0
    %p167 = por %p165, %p166
    %p168 = scmp.ne.s32.totalorder %s160, %s162
    %p169 = scmp.eq.s32.totalorder %s21, 1
    %p170 = por %p168, %p169
    %p171 = scmp.ne.s32.totalorder %s162, %s163
    %p172 = scmp.eq.s32.totalorder %s21, 0
    %p173 = por %p171, %p172
    %p174 = scmp.ne.s32.totalorder %s162, %s163
    %p175 = scmp.eq.s32.totalorder %s22, 1
    %p176 = por %p174, %p175
    %p178 = scmp.ne.s32.totalorder %s163, %s177
    %p179 = scmp.eq.s32.totalorder %s22, 0
    %p180 = por %p178, %p179
    %s182 = sadd.s32 %s181, 1
    %p185 = scmp.eq.s32.totalorder %s16, 1
    %p186 = scmp.ne.s32.totalorder %s181, %s183
    %p187 = scmp.eq.s32.totalorder %s16, 0
    %p188 = por %p186, %p187
    %p189 = scmp.ne.s32.totalorder %s181, %s183
    %p190 = scmp.eq.s32.totalorder %s21, 1
    %p191 = por %p189, %p190
    %p192 = scmp.ne.s32.totalorder %s183, %s184
    %p193 = scmp.eq.s32.totalorder %s21, 0
    %p194 = por %p192, %p193
    %p195 = scmp.ne.s32.totalorder %s183, %s184
    %p196 = scmp.eq.s32.totalorder %s22, 1
    %p197 = por %p195, %p196
    %p199 = scmp.ne.s32.totalorder %s184, %s198
    %p200 = scmp.eq.s32.totalorder %s22, 0
    %p201 = por %p199, %p200
    %s202 = ssub.s32 %s16, %s23
    %p203 = scmp.eq.s32.totalorder %s202, 0
    %s205 = sadd.s32 %s204, 1
    %s206 = scalar_select %p203, %s204, %s205
    %p209 = pneg %p203
    %p210 = scmp.eq.s32.totalorder %s16, 1
    %p211 = por %p209, %p210
    %p212 = scmp.ne.s32.totalorder %s204, %s207
    %p213 = scmp.eq.s32.totalorder %s16, 0
    %p214 = por %p212, %p213
    %p215 = scmp.ne.s32.totalorder %s204, %s207
    %p216 = scmp.eq.s32.totalorder %s21, 1
    %p217 = por %p215, %p216
    %p218 = scmp.ne.s32.totalorder %s207, %s208
    %p219 = scmp.eq.s32.totalorder %s21, 0
    %p220 = por %p218, %p219
    %p221 = scmp.ne.s32.totalorder %s207, %s208
    %p222 = scmp.eq.s32.totalorder %s22, 1
    %p223 = por %p221, %p222
    %p225 = scmp.ne.s32.totalorder %s208, %s224
    %p226 = scmp.eq.s32.totalorder %s22, 0
    %p227 = por %p225, %p226
    %s228 = ssub.s32 %s16, %s23
    %p229 = scmp.eq.s32.totalorder %s228, 0
    %s231 = sadd.s32 %s230, 1
    %s232 = scalar_select %p229, %s230, %s231
    %p235 = pneg %p229
    %p236 = scmp.eq.s32.totalorder %s16, 1
    %p237 = por %p235, %p236
    %p238 = scmp.ne.s32.totalorder %s230, %s233
    %p239 = scmp.eq.s32.totalorder %s16, 0
    %p240 = por %p238, %p239
    %p241 = scmp.ne.s32.totalorder %s230, %s233
    %p242 = scmp.eq.s32.totalorder %s21, 1
    %p243 = por %p241, %p242
    %p244 = scmp.ne.s32.totalorder %s233, %s234
    %p245 = scmp.eq.s32.totalorder %s21, 0
    %p246 = por %p244, %p245
    %p247 = scmp.ne.s32.totalorder %s233, %s234
    %p248 = scmp.eq.s32.totalorder %s22, 1
    %p249 = por %p247, %p248
    %p251 = scmp.ne.s32.totalorder %s234, %s250
    %p252 = scmp.eq.s32.totalorder %s22, 0
    %p253 = por %p251, %p252
    %p254 = scmp.le.s32.totalorder 1, %s16
    %p255 = scmp.lt.s32.totalorder %s16, 3
    %p256 = pnand %p254, %p255
    %p257 = pneg %p256
    // Predicated region
    $region9: #{side_se_conv2d.4} parent=5 // pred_check
      _
    $region10: #{side_se_conv2d.4} parent=5 // pred_check_branch
      %259 = sbr.rel (%p256) target = $region12
    $region11: #{side_se_conv2d.4} parent=5 // pred_region
      %s260 = ssub.s32 %s16, 1
      // Predicated region
      $region13: #{side_se_conv2d.4} parent=11 // pred_check
        %p261 = pneg %p89
      $region14: #{side_se_conv2d.4} parent=11 // pred_check_branch
        %263 = sbr.rel (%p261) target = $region16
      $region15: #{side_se_conv2d.4} parent=11 // pred_region
        _
      $region16: #{side_se_conv2d.4} parent=11 // pred_fallthru
        _
      // Predicated region
      $region17: #{side_se_conv2d.4} parent=11 // pred_check
        %p264 = pneg %p110
      $region18: #{side_se_conv2d.4} parent=11 // pred_check_branch
        %266 = sbr.rel (%p264) target = $region20
      $region19: #{side_se_conv2d.4} parent=11 // pred_region
        _
      $region20: #{side_se_conv2d.4} parent=11 // pred_fallthru
        _
      // Predicated region
      $region21: #{side_se_conv2d.4} parent=11 // pred_check
        %p267 = pneg %p131
      $region22: #{side_se_conv2d.4} parent=11 // pred_check_branch
        %269 = sbr.rel (%p267) target = $region24
      $region23: #{side_se_conv2d.4} parent=11 // pred_region
        _
      $region24: #{side_se_conv2d.4} parent=11 // pred_fallthru
        _
      // Predicated region
      $region25: #{side_se_conv2d.4} parent=11 // pred_check
        %p270 = pneg %p152
      $region26: #{side_se_conv2d.4} parent=11 // pred_check_branch
        %272 = sbr.rel (%p270) target = $region28
      $region27: #{side_se_conv2d.4} parent=11 // pred_region
        _
      $region28: #{side_se_conv2d.4} parent=11 // pred_fallthru
        _
      // Predicated region
      $region29: #{side_se_conv2d.4} parent=11 // pred_check
        %p273 = pneg %p173
      $region30: #{side_se_conv2d.4} parent=11 // pred_check_branch
        %275 = sbr.rel (%p273) target = $region32
      $region31: #{side_se_conv2d.4} parent=11 // pred_region
        _
      $region32: #{side_se_conv2d.4} parent=11 // pred_fallthru
        _
      // Predicated region
      $region33: #{side_se_conv2d.4} parent=11 // pred_check
        %p276 = pneg %p194
      $region34: #{side_se_conv2d.4} parent=11 // pred_check_branch
        %278 = sbr.rel (%p276) target = $region36
      $region35: #{side_se_conv2d.4} parent=11 // pred_region
        _
      $region36: #{side_se_conv2d.4} parent=11 // pred_fallthru
        _
    $region12: #{side_se_conv2d.4} parent=5 // pred_fallthru
      _
    %p279 = scmp.lt.s32.totalorder %s16, 2
    // Predicated region
    $region37: #{side_se_conv2d.4} parent=5 // pred_check
      %p280 = pneg %p279
    $region38: #{side_se_conv2d.4} parent=5 // pred_check_branch
      %282 = sbr.rel (%p280) target = $region40
    $region39: #{side_se_conv2d.4} parent=5 // pred_region
      // Predicated region
      $region41: #{side_se_conv2d.4} parent=39 // pred_check
        %p283 = pneg %p36
      $region42: #{side_se_conv2d.4} parent=39 // pred_check_branch
        %285 = sbr.rel (%p283) target = $region44
      $region43: #{side_se_conv2d.4} parent=39 // pred_region
        %p286 = scmp.lt.s32.totalorder %s16, 1
        %s287 = scalar_select %p286, %s16, 1
        %s288 = smul.addr %s287, 4
        %s289 = smul.addr %s288, 4
        %s290 = scalar_lea.vmem %s0, %s289
      $region44: #{side_se_conv2d.4} parent=39 // pred_fallthru
        _
      // Predicated region
      $region45: #{side_se_conv2d.4} parent=39 // pred_check
        %p291 = pneg %p62
      $region46: #{side_se_conv2d.4} parent=39 // pred_check_branch
        %293 = sbr.rel (%p291) target = $region48
      $region47: #{side_se_conv2d.4} parent=39 // pred_region
        %p294 = scmp.lt.s32.totalorder %s16, 1
        %s295 = scalar_select %p294, %s16, 1
        %s296 = smul.addr %s295, 4
        %s297 = smul.addr %s296, 8
        %s298 = scalar_lea.vmem %s1, %s297
      $region48: #{side_se_conv2d.4} parent=39 // pred_fallthru
        _
    $region40: #{side_se_conv2d.4} parent=5 // pred_fallthru
      _
    %p299 = scmp.le.s32.totalorder 1, %s16
    %p300 = scmp.lt.s32.totalorder %s16, 3
    %p301 = pnand %p299, %p300
    %p302 = pneg %p301
    // Predicated region
    $region49: #{side_se_conv2d.4} parent=5 // pred_check
      _
    $region50: #{side_se_conv2d.4} parent=5 // pred_check_branch
      %304 = sbr.rel (%p301) target = $region52
    $region51: #{side_se_conv2d.4} parent=5 // pred_region
      %s305 = ssub.s32 %s16, 1
      %p306 = scmp.lt.s32.totalorder %s21, 1
      %s307 = scalar_select %p306, %s21, 1
      %s308 = smul.addr %s307, 4
      %s309 = smul.addr %s308, 4
      %s310 = scalar_lea.vmem %s0, %s309
      %p311 = pneg %p42
      %p312 = pneg %p39
      %p313 = scmp.lt.s32.totalorder %s21, 1
      %s314 = scalar_select %p313, %s21, 1
      %s315 = smul.addr %s314, 4
      %s316 = smul.addr %s315, 8
      %s317 = scalar_lea.vmem %s1, %s316
      %p318 = pneg %p68
      %p319 = pneg %p65
      %p320 = pneg %p89
      %p321 = pneg %p86
      %p322 = pneg %p110
      %p323 = pneg %p107
      %p324 = pneg %p131
      %p325 = pneg %p128
      %p326 = pneg %p152
      %p327 = pneg %p149
      %p328 = pneg %p173
      %p329 = pneg %p170
      %p330 = pneg %p194
      %p331 = pneg %p191
      %p332 = pneg %p220
      %p333 = pneg %p217
      %p334 = scmp.lt.s32.totalorder %s21, 1
      %s335 = scalar_select %p334, %s21, 1
      %s336 = smul.addr %s335, 4
      %s337 = smul.addr %s336, 4
      %s338 = scalar_lea.vmem %s8, %s337
      %p339 = pneg %p246
      %p340 = pneg %p243
      %p341 = scmp.lt.s32.totalorder %s21, 1
      %s342 = scalar_select %p341, %s21, 1
      %s343 = smul.addr %s342, 4
      %s344 = smul.addr %s343, 8
      %s345 = scalar_lea.vmem %s9, %s344
      %p346 = scmp.lt.s32.totalorder %s21, 1
      %s347 = scalar_select %p346, %s21, 1
      %s348 = smul.addr %s347, 4
      %s349 = smul.addr %s348, 4
      %s350 = scalar_lea.vmem %s0, %s349
      %p351 = scmp.lt.s32.totalorder %s21, 1
      %s352 = scalar_select %p351, %s21, 1
      %s353 = smul.addr %s352, 4
      %s354 = smul.addr %s353, 8
      %s355 = scalar_lea.vmem %s1, %s354
      %p356 = scmp.lt.s32.totalorder %s21, 1
      %s357 = scalar_select %p356, %s21, 1
      %s358 = smul.addr %s357, 4
      %s359 = smul.addr %s358, 4
      %s360 = scalar_lea.vmem %s8, %s359
      %p361 = scmp.lt.s32.totalorder %s21, 1
      %s362 = scalar_select %p361, %s21, 1
      %s363 = smul.addr %s362, 4
      %s364 = smul.addr %s363, 8
      %s365 = scalar_lea.vmem %s9, %s364
      %v367 = vld [vmem:[%s350] sm:$0xf]
      %v368 = vld [vmem:[%s350 + $0x4] sm:$0xf]
      %v369 = vld [vmem:[%s350 + $0x8] sm:$0xf]
      %v370 = vld [vmem:[%s350 + $0xc] sm:$0xf]
      %v371 = vunpack.c.l.bf16 %v367
      %v372 = vunpack.c.l.bf16 %v368
      %v373 = vunpack.c.l.bf16 %v369
      %v374 = vunpack.c.l.bf16 %v370
      %v375 = vld [vmem:[%s2] sm:$0xff]
      %v376 = vld [vmem:[%s2 + $0x8] sm:$0xff]
      %v377 = vld [vmem:[%s2 + $0x10] sm:$0xff]
      %v378 = vld [vmem:[%s2 + $0x18] sm:$0xff]
      %380 = vset.pattern.permute.xlu0 0
      %381 = vperm.xlu0 %380, %v375
      %v382 = vpop.permute.xlu0 %381
      %385 = vset.pattern.permute.xlu0 0
      %386 = vperm.xlu0 %385, %v376
      %v387 = vpop.permute.xlu0 %386
      %390 = vset.pattern.permute.xlu0 0
      %391 = vperm.xlu0 %390, %v377
      %v392 = vpop.permute.xlu0 %391
      %395 = vset.pattern.permute.xlu0 0
      %396 = vperm.xlu0 %395, %v378
      %v397 = vpop.permute.xlu0 %396
      %v399 = vmul.f32 %v371, %v382
      %v400 = vmul.f32 %v372, %v387
      %v401 = vmul.f32 %v373, %v392
      %v402 = vmul.f32 %v374, %v397
      %403 = vset.pattern.permute.xlu0 1
      %404 = vperm.xlu0 %403, %v375
      %v405 = vpop.permute.xlu0 %404
      %407 = vset.pattern.permute.xlu0 1
      %408 = vperm.xlu0 %407, %v376
      %v409 = vpop.permute.xlu0 %408
      %411 = vset.pattern.permute.xlu0 1
      %412 = vperm.xlu0 %411, %v377
      %v413 = vpop.permute.xlu0 %412
      %415 = vset.pattern.permute.xlu0 1
      %416 = vperm.xlu0 %415, %v378
      %v417 = vpop.permute.xlu0 %416
      %v419 = vadd.f32 %v399, %v405
      %v420 = vadd.f32 %v400, %v409
      %v421 = vadd.f32 %v401, %v413
      %v422 = vadd.f32 %v402, %v417
      %v423 = vmax.f32 %v419, 0.0
      %v424 = vmax.f32 %v420, 0.0
      %v425 = vmax.f32 %v421, 0.0
      %v426 = vmax.f32 %v422, 0.0
      %vm427 = vcmask 523264
      %v428 = vsel %vm427, %v423, 0.0
      %429 = vadd.xlane.f32.xlu0 %v428
      %v430 = vpop.xlane.xlu0 %429
      %v431 = vsel %vm427, %v424, 0.0
      %432 = vadd.xlane.f32.xlu0 %v431
      %v433 = vpop.xlane.xlu0 %432
      %v434 = vsel %vm427, %v425, 0.0
      %435 = vadd.xlane.f32.xlu0 %v434
      %v436 = vpop.xlane.xlu0 %435
      %v437 = vsel %vm427, %v426, 0.0
      %438 = vadd.xlane.f32.xlu0 %v437
      %v439 = vpop.xlane.xlu0 %438
      %v440 = vmul.f32 %v430, 0.015625
      %v441 = vmul.f32 %v433, 0.015625
      %v442 = vmul.f32 %v436, 0.015625
      %v443 = vmul.f32 %v439, 0.015625
      %v444 = vpack.c.bf16 %v441, %v440
      %v445 = vpack.c.bf16 %v443, %v442
      %v446 = vld [vmem:[%s4] sm:$0x1]
      %v447 = vld [vmem:[%s3] sm:$0x3]
      %449 = vrot.lane.b32.xlu0 %v447, 127
      %v450 = vpop.permute.xlu0 %449
      %vm452 = vcmask 261120
      %v454 = vsel %vm452, %v446, 0
      %456 = vmatprep.subr.bf16.mxu0 0
      %457 = vmatpush1.bf16.msra.mxu0 %v444
      %458 = vmatprep.subr.bf16.mxu0 0
      %459 = vmatpush1.bf16.msra.mxu0 %v445
      %460 = vmatprep.subr.bf16.mxu0 0
      %461 = vmatpush1.bf16.msra.mxu0 0
      %462 = vmatprep.subr.bf16.mxu0 0
      %463 = vmatpush1.bf16.msra.mxu0 0
      %464 = vmatprep.subr.bf16.mxu0 0
      %465 = vmatpush1.bf16.msra.mxu0 0
      %466 = vmatprep.subr.bf16.mxu0 0
      %467 = vmatpush1.bf16.msra.mxu0 0
      %468 = vmatprep.subr.bf16.mxu0 0
      %469 = vmatpush1.bf16.msra.mxu0 0
      %470 = vmatprep.subr.bf16.mxu0 0
      %471 = vmatpush1.bf16.msra.mxu0 0
      %472 = vmatprep.subr.bf16.mxu0 0
      %473 = vmatpush1.bf16.msra.mxu0 0
      %474 = vmatprep.subr.bf16.mxu0 0
      %475 = vmatpush1.bf16.msra.mxu0 0
      %476 = vmatprep.subr.bf16.mxu0 0
      %477 = vmatpush1.bf16.msra.mxu0 0
      %478 = vmatprep.subr.bf16.mxu0 0
      %479 = vmatpush1.bf16.msra.mxu0 0
      %480 = vmatprep.subr.bf16.mxu0 0
      %481 = vmatpush1.bf16.msra.mxu0 0
      %482 = vmatprep.subr.bf16.mxu0 0
      %483 = vmatpush1.bf16.msra.mxu0 0
      %484 = vmatprep.subr.bf16.mxu0 0
      %485 = vmatpush1.bf16.msra.mxu0 0
      %486 = vmatprep.subr.bf16.mxu0 0
      %487 = vmatpush1.bf16.msra.mxu0 0
      %488 = vmatprep.mubr.bf16.mxu0 0
      %489 = vmatmul.mubr.bf16.gmra.mrb[0].mxu0 %v454
      %v490 = vpop.f32.mrb[0].mxu0
      %v491 = vadd.f32 %v450, %v490
      %v492 = vpop.f32.mrb[0].mxu0
      %v493 = vpop.f32.mrb[0].mxu0
      %v494 = vpop.f32.mrb[0].mxu0
      %495 = vdwg.mxu0
      %v496 = vmax.f32 %v491, 0.0
      %v497 = vld [vmem:[%s5] sm:$0xf]
      %v498 = vld [vmem:[%s5 + $0x4] sm:$0xf]
      %v499 = vld [vmem:[%s5 + $0x8] sm:$0xf]
      %v500 = vld [vmem:[%s5 + $0xc] sm:$0xf]
      %v501 = vpack.c.bf16 %v496, %v496
      %v502 = vld [vmem:[%s3] sm:$0xff]
      %v503 = vld [vmem:[%s3 + $0x8] sm:$0xff]
      %v504 = vld [vmem:[%s3 + $0x10] sm:$0xff]
      %v505 = vld [vmem:[%s3 + $0x18] sm:$0xff]
      %v510 = vunpack.c.l.b16 %v497
      %v511 = vunpack.c.l.b16 %v498
      %v512 = vunpack.c.l.b16 %v499
      %v513 = vunpack.c.l.b16 %v500
      %v514 = vpack.c.b16 %v511, %v510
      %v515 = vpack.c.b16 %v513, %v512
      %520 = vrot.lane.b32.xlu0 %v502, 126
      %v521 = vpop.permute.xlu0 %520
      %522 = vrot.lane.b32.xlu0 %v503, 126
      %v523 = vpop.permute.xlu0 %522
      %524 = vrot.lane.b32.xlu0 %v504, 126
      %v525 = vpop.permute.xlu0 %524
      %526 = vrot.lane.b32.xlu0 %v505, 126
      %v527 = vpop.permute.xlu0 %526
      %vm532 = vcmask 15360
      %v534 = vsel %vm532, %v514, 0
      %v537 = vsel %vm532, %v515, 0
      %vm539 = vcmask 1040384
      %v541 = vsel %vm539, %v501, 0
      %543 = vmatprep.subr.bf16.mxu0 0
      %544 = vmatpush1.bf16.msra.mxu0 %v541
      %545 = vmatprep.subr.bf16.mxu0 0
      %546 = vmatpush1.bf16.msra.mxu0 0
      %547 = vmatprep.subr.bf16.mxu0 0
      %548 = vmatpush1.bf16.msra.mxu0 0
      %549 = vmatprep.subr.bf16.mxu0 0
      %550 = vmatpush1.bf16.msra.mxu0 0
      %551 = vmatprep.subr.bf16.mxu0 0
      %552 = vmatpush1.bf16.msra.mxu0 0
      %553 = vmatprep.subr.bf16.mxu0 0
      %554 = vmatpush1.bf16.msra.mxu0 0
      %555 = vmatprep.subr.bf16.mxu0 0
      %556 = vmatpush1.bf16.msra.mxu0 0
      %557 = vmatprep.subr.bf16.mxu0 0
      %558 = vmatpush1.bf16.msra.mxu0 0
      %559 = vmatprep.subr.bf16.mxu0 0
      %560 = vmatpush1.bf16.msra.mxu0 0
      %561 = vmatprep.subr.bf16.mxu0 0
      %562 = vmatpush1.bf16.msra.mxu0 0
      %563 = vmatprep.subr.bf16.mxu0 0
      %564 = vmatpush1.bf16.msra.mxu0 0
      %565 = vmatprep.subr.bf16.mxu0 0
      %566 = vmatpush1.bf16.msra.mxu0 0
      %567 = vmatprep.subr.bf16.mxu0 0
      %568 = vmatpush1.bf16.msra.mxu0 0
      %569 = vmatprep.subr.bf16.mxu0 0
      %570 = vmatpush1.bf16.msra.mxu0 0
      %571 = vmatprep.subr.bf16.mxu0 0
      %572 = vmatpush1.bf16.msra.mxu0 0
      %573 = vmatprep.subr.bf16.mxu0 0
      %574 = vmatpush1.bf16.msra.mxu0 0
      %575 = vmatprep.mubr.bf16.mxu0 0
      %576 = vmatmul.mubr.bf16.gmra.mrb[0].mxu0 %v534
      %v577 = vpop.f32.mrb[0].mxu0
      %v578 = vadd.f32 %v521, %v577
      %v579 = vpop.f32.mrb[0].mxu0
      %v580 = vpop.f32.mrb[0].mxu0
      %v581 = vadd.f32 %v523, %v580
      %v582 = vpop.f32.mrb[0].mxu0
      %583 = vmatprep.mubr.bf16.mxu0 0
      %584 = vmatmul.mubr.bf16.gmra.mrb[0].mxu0 %v537
      %v585 = vpop.f32.mrb[0].mxu0
      %v586 = vadd.f32 %v525, %v585
      %v587 = vpop.f32.mrb[0].mxu0
      %v588 = vpop.f32.mrb[0].mxu0
      %v589 = vadd.f32 %v527, %v588
      %v590 = vpop.f32.mrb[0].mxu0
      %591 = vdwg.mxu0
      %v592 = vxor.u32 %v578, 2147483648
      %v593 = vxor.u32 %v581, 2147483648
      %v594 = vxor.u32 %v586, 2147483648
      %v595 = vxor.u32 %v589, 2147483648
      %v596 = vmul.f32 %v592, 1.442695
      %v597 = vpow.pop %v596
      %v598 = vmul.f32 %v593, 1.442695
      %v599 = vpow.pop %v598
      %v600 = vmul.f32 %v594, 1.442695
      %v601 = vpow.pop %v600
      %v602 = vmul.f32 %v595, 1.442695
      %v603 = vpow.pop %v602
      %v604 = vadd.f32 %v597, 1.0
      %v605 = vadd.f32 %v599, 1.0
      %v606 = vadd.f32 %v601, 1.0
      %v607 = vadd.f32 %v603, 1.0
      %v608 = vrcp.pop %v604
      %v609 = vmul.f32 1.0, %v608
      %v610 = vrcp.pop %v605
      %v611 = vmul.f32 1.0, %v610
      %v612 = vrcp.pop %v606
      %v613 = vmul.f32 1.0, %v612
      %v614 = vrcp.pop %v607
      %v615 = vmul.f32 1.0, %v614
      %617 = vset.pattern.permute.xlu0 0
      %618 = vperm.xlu0 %617, %v609
      %v619 = vpop.permute.xlu0 %618
      %622 = vset.pattern.permute.xlu0 0
      %623 = vperm.xlu0 %622, %v611
      %v624 = vpop.permute.xlu0 %623
      %627 = vset.pattern.permute.xlu0 0
      %628 = vperm.xlu0 %627, %v613
      %v629 = vpop.permute.xlu0 %628
      %632 = vset.pattern.permute.xlu0 0
      %633 = vperm.xlu0 %632, %v615
      %v634 = vpop.permute.xlu0 %633
      %v636 = vmul.f32 %v423, %v619
      %v637 = vmul.f32 %v424, %v624
      %v638 = vmul.f32 %v425, %v629
      %v639 = vmul.f32 %v426, %v634
      %v640 = vpack.c.bf16 %v637, %v636
      %v641 = vpack.c.bf16 %v639, %v638
      %v642 = vld [vmem:[%s6] sm:$0xf]
      %v643 = vld [vmem:[%s6 + $0x4] sm:$0xf]
      %v644 = vld [vmem:[%s6 + $0x8] sm:$0xf]
      %v645 = vld [vmem:[%s6 + $0xc] sm:$0xf]
      %v646 = vld [vmem:[%s355] sm:$0xff]
      %v647 = vld [vmem:[%s355 + $0x8] sm:$0xff]
      %v648 = vld [vmem:[%s355 + $0x10] sm:$0xff]
      %v649 = vld [vmem:[%s355 + $0x18] sm:$0xff]
      %v650 = vpack.c.bf16 %v647, %v646
      %v651 = vpack.c.bf16 %v649, %v648
      %v652 = vld [vmem:[%s7] sm:$0xf]
      %v653 = vld [vmem:[%s7 + $0x4] sm:$0xf]
      %v654 = vld [vmem:[%s7 + $0x8] sm:$0xf]
      %v655 = vld [vmem:[%s7 + $0xc] sm:$0xf]
      %v660 = vunpack.c.l.b16 %v652
      %v661 = vunpack.c.l.b16 %v653
      %v662 = vunpack.c.l.b16 %v654
      %v663 = vunpack.c.l.b16 %v655
      %v664 = vpack.c.b16 %v661, %v660
      %v665 = vpack.c.b16 %v663, %v662
      %v667 = vsel %vm452, %v664, 0
      %v670 = vsel %vm452, %v665, 0
      %672 = vmatprep.subr.bf16.mxu0 0
      %673 = vmatpush1.bf16.msra.mxu0 %v640
      %674 = vmatprep.subr.bf16.mxu0 0
      %675 = vmatpush1.bf16.msra.mxu0 %v641
      %676 = vmatprep.subr.bf16.mxu0 0
      %677 = vmatpush1.bf16.msra.mxu0 0
      %678 = vmatprep.subr.bf16.mxu0 0
      %679 = vmatpush1.bf16.msra.mxu0 0
      %680 = vmatprep.subr.bf16.mxu0 0
      %681 = vmatpush1.bf16.msra.mxu0 0
      %682 = vmatprep.subr.bf16.mxu0 0
      %683 = vmatpush1.bf16.msra.mxu0 0
      %684 = vmatprep.subr.bf16.mxu0 0
      %685 = vmatpush1.bf16.msra.mxu0 0
      %686 = vmatprep.subr.bf16.mxu0 0
      %687 = vmatpush1.bf16.msra.mxu0 0
      %688 = vmatprep.subr.bf16.mxu0 0
      %689 = vmatpush1.bf16.msra.mxu0 0
      %690 = vmatprep.subr.bf16.mxu0 0
      %691 = vmatpush1.bf16.msra.mxu0 0
      %692 = vmatprep.subr.bf16.mxu0 0
      %693 = vmatpush1.bf16.msra.mxu0 0
      %694 = vmatprep.subr.bf16.mxu0 0
      %695 = vmatpush1.bf16.msra.mxu0 0
      %696 = vmatprep.subr.bf16.mxu0 0
      %697 = vmatpush1.bf16.msra.mxu0 0
      %698 = vmatprep.subr.bf16.mxu0 0
      %699 = vmatpush1.bf16.msra.mxu0 0
      %700 = vmatprep.subr.bf16.mxu0 0
      %701 = vmatpush1.bf16.msra.mxu0 0
      %702 = vmatprep.subr.bf16.mxu0 0
      %703 = vmatpush1.bf16.msra.mxu0 0
      %704 = vmatprep.mubr.bf16.mxu0 0
      %705 = vmatmul.mubr.bf16.gmra.mrb[0].mxu0 %v667
      %v706 = vpop.f32.mrb[0].mxu0
      %v707 = vadd.f32 0.0, %v706
      %v708 = vpop.f32.mrb[0].mxu0
      %v709 = vpop.f32.mrb[0].mxu0
      %v710 = vadd.f32 0.0, %v709
      %v711 = vpop.f32.mrb[0].mxu0
      %712 = vmatprep.mubr.bf16.mxu0 0
      %713 = vmatmul.mubr.bf16.gmra.mrb[0].mxu0 %v670
      %v714 = vpop.f32.mrb[0].mxu0
      %v715 = vadd.f32 0.0, %v714
      %v716 = vpop.f32.mrb[0].mxu0
      %v717 = vpop.f32.mrb[0].mxu0
      %v718 = vadd.f32 0.0, %v717
      %v719 = vpop.f32.mrb[0].mxu0
      %720 = vdwg.mxu0
      %v725 = vunpack.c.l.b16 %v642
      %v726 = vunpack.c.l.b16 %v643
      %v727 = vunpack.c.l.b16 %v644
      %v728 = vunpack.c.l.b16 %v645
      %v729 = vpack.c.b16 %v726, %v725
      %v730 = vpack.c.b16 %v728, %v727
      %v732 = vsel %vm452, %v729, 0
      %v735 = vsel %vm452, %v730, 0
      %737 = vmatprep.subr.bf16.mxu0 0
      %738 = vmatpush1.bf16.msra.mxu0 %v650
      %739 = vmatprep.subr.bf16.mxu0 0
      %740 = vmatpush1.bf16.msra.mxu0 %v651
      %741 = vmatprep.subr.bf16.mxu0 0
      %742 = vmatpush1.bf16.msra.mxu0 0
      %743 = vmatprep.subr.bf16.mxu0 0
      %744 = vmatpush1.bf16.msra.mxu0 0
      %745 = vmatprep.subr.bf16.mxu0 0
      %746 = vmatpush1.bf16.msra.mxu0 0
      %747 = vmatprep.subr.bf16.mxu0 0
      %748 = vmatpush1.bf16.msra.mxu0 0
      %749 = vmatprep.subr.bf16.mxu0 0
      %750 = vmatpush1.bf16.msra.mxu0 0
      %751 = vmatprep.subr.bf16.mxu0 0
      %752 = vmatpush1.bf16.msra.mxu0 0
      %753 = vmatprep.subr.bf16.mxu0 0
      %754 = vmatpush1.bf16.msra.mxu0 0
      %755 = vmatprep.subr.bf16.mxu0 0
      %756 = vmatpush1.bf16.msra.mxu0 0
      %757 = vmatprep.subr.bf16.mxu0 0
      %758 = vmatpush1.bf16.msra.mxu0 0
      %759 = vmatprep.subr.bf16.mxu0 0
      %760 = vmatpush1.bf16.msra.mxu0 0
      %761 = vmatprep.subr.bf16.mxu0 0
      %762 = vmatpush1.bf16.msra.mxu0 0
      %763 = vmatprep.subr.bf16.mxu0 0
      %764 = vmatpush1.bf16.msra.mxu0 0
      %765 = vmatprep.subr.bf16.mxu0 0
      %766 = vmatpush1.bf16.msra.mxu0 0
      %767 = vmatprep.subr.bf16.mxu0 0
      %768 = vmatpush1.bf16.msra.mxu0 0
      %769 = vmatprep.mubr.bf16.mxu0 0
      %770 = vmatmul.mubr.bf16.gmra.mrb[0].mxu0 %v732
      %v771 = vpop.f32.mrb[0].mxu0
      %v772 = vadd.f32 %v707, %v771
      %v773 = vpop.f32.mrb[0].mxu0
      %v774 = vpop.f32.mrb[0].mxu0
      %v775 = vadd.f32 %v710, %v774
      %v776 = vpop.f32.mrb[0].mxu0
      %777 = vmatprep.mubr.bf16.mxu0 0
      %778 = vmatmul.mubr.bf16.gmra.mrb[0].mxu0 %v735
      %v779 = vpop.f32.mrb[0].mxu0
      %v780 = vadd.f32 %v715, %v779
      %v781 = vpop.f32.mrb[0].mxu0
      %v782 = vpop.f32.mrb[0].mxu0
      %v783 = vadd.f32 %v718, %v782
      %v784 = vpop.f32.mrb[0].mxu0
      %785 = vdwg.mxu0
      %786 = vset.pattern.permute.xlu0 3
      %787 = vperm.xlu0 %786, %v502
      %v788 = vpop.permute.xlu0 %787
      %790 = vset.pattern.permute.xlu0 3
      %791 = vperm.xlu0 %790, %v503
      %v792 = vpop.permute.xlu0 %791
      %794 = vset.pattern.permute.xlu0 3
      %795 = vperm.xlu0 %794, %v504
      %v796 = vpop.permute.xlu0 %795
      %798 = vset.pattern.permute.xlu0 3
      %799 = vperm.xlu0 %798, %v505
      %v800 = vpop.permute.xlu0 %799
      %v802 = vadd.f32 %v772, %v788
      %v803 = vadd.f32 %v775, %v792
      %v804 = vadd.f32 %v780, %v796
      %v805 = vadd.f32 %v783, %v800
      %v806 = vpack.c.bf16 %v803, %v802
      %v807 = vpack.c.bf16 %v805, %v804
      %v810 = vunpack.c.l.b16 %v806
      %v811 = vunpack.c.h.b16 %v806
      %v812 = vunpack.c.l.b16 %v807
      %v813 = vunpack.c.h.b16 %v807
      %v814 = vpack.c.b16 %v810, %v810
      %v815 = vpack.c.b16 %v811, %v811
      %v816 = vpack.c.b16 %v812, %v812
      %v817 = vpack.c.b16 %v813, %v813
      %vm822 = vcmask 519168
      %823 = vst.msk [vmem:[%s360] sm:$0xf] %vm822, %v814
      %824 = vst.msk [vmem:[%s360 + $0x4] sm:$0xf] %vm822, %v815
      %825 = vst.msk [vmem:[%s360 + $0x8] sm:$0xf] %vm822, %v816
      %826 = vst.msk [vmem:[%s360 + $0xc] sm:$0xf] %vm822, %v817
      %v827 = vsel %vm427, %v802, 0.0
      %828 = vadd.xlane.f32.xlu0 %v827
      %v829 = vpop.xlane.xlu0 %828
      %v830 = vsel %vm427, %v803, 0.0
      %831 = vadd.xlane.f32.xlu0 %v830
      %v832 = vpop.xlane.xlu0 %831
      %v833 = vsel %vm427, %v804, 0.0
      %834 = vadd.xlane.f32.xlu0 %v833
      %v835 = vpop.xlane.xlu0 %834
      %v836 = vsel %vm427, %v805, 0.0
      %837 = vadd.xlane.f32.xlu0 %v836
      %v838 = vpop.xlane.xlu0 %837
      %vm839 = vcmask 7168
      %840 = vst.msk [vmem:[%s365] sm:$0xff] %vm839, %v829
      %841 = vst.msk [vmem:[%s365 + $0x8] sm:$0xff] %vm839, %v832
      %842 = vst.msk [vmem:[%s365 + $0x10] sm:$0xff] %vm839, %v835
      %843 = vst.msk [vmem:[%s365 + $0x18] sm:$0xff] %vm839, %v838
      %v844 = vmul.f32 %v802, %v802
      %v845 = vmul.f32 %v803, %v803
      %v846 = vmul.f32 %v804, %v804
      %v847 = vmul.f32 %v805, %v805
      %v848 = vsel %vm427, %v844, 0.0
      %849 = vadd.xlane.f32.xlu0 %v848
      %v850 = vpop.xlane.xlu0 %849
      %v851 = vsel %vm427, %v845, 0.0
      %852 = vadd.xlane.f32.xlu0 %v851
      %v853 = vpop.xlane.xlu0 %852
      %v854 = vsel %vm427, %v846, 0.0
      %855 = vadd.xlane.f32.xlu0 %v854
      %v856 = vpop.xlane.xlu0 %855
      %v857 = vsel %vm427, %v847, 0.0
      %858 = vadd.xlane.f32.xlu0 %v857
      %v859 = vpop.xlane.xlu0 %858
      %vm860 = vcmask 15368
      %861 = vst.msk [vmem:[%s365] sm:$0xff] %vm860, %v850
      %862 = vst.msk [vmem:[%s365 + $0x8] sm:$0xff] %vm860, %v853
      %863 = vst.msk [vmem:[%s365 + $0x10] sm:$0xff] %vm860, %v856
      %864 = vst.msk [vmem:[%s365 + $0x18] sm:$0xff] %vm860, %v859
      %p865 = scmp.lt.s32.totalorder %s21, 1
      %s866 = scalar_select %p865, %s21, 1
      %s867 = smul.addr %s866, 4
      %s868 = smul.addr %s867, 4
      %s869 = scalar_lea.vmem %s8, %s868
      %p870 = scmp.lt.s32.totalorder %s21, 1
      %s871 = scalar_select %p870, %s21, 1
      %s872 = smul.addr %s871, 4
      %s873 = smul.addr %s872, 8
      %s874 = scalar_lea.vmem %s9, %s873
      // Predicated region
      $region53: #{side_se_conv2d.4} parent=51 // pred_check
        %p875 = pneg %p217
      $region54: #{side_se_conv2d.4} parent=51 // pred_check_branch
        %877 = sbr.rel (%p875) target = $region56
      $region55: #{side_se_conv2d.4} parent=51 // pred_region
        _
      $region56: #{side_se_conv2d.4} parent=51 // pred_fallthru
        _
      // Predicated region
      $region57: #{side_se_conv2d.4} parent=51 // pred_check
        %p878 = pneg %p243
      $region58: #{side_se_conv2d.4} parent=51 // pred_check_branch
        %880 = sbr.rel (%p878) target = $region60
      $region59: #{side_se_conv2d.4} parent=51 // pred_region
        _
      $region60: #{side_se_conv2d.4} parent=51 // pred_fallthru
        _
    $region52: #{side_se_conv2d.4} parent=5 // pred_fallthru
      _
    %p881 = scmp.le.s32.totalorder 2, %s16
    // Predicated region
    $region61: #{side_se_conv2d.4} parent=5 // pred_check
      %p882 = pneg %p881
    $region62: #{side_se_conv2d.4} parent=5 // pred_check_branch
      %884 = sbr.rel (%p882) target = $region64
    $region63: #{side_se_conv2d.4} parent=5 // pred_region
      %s885 = ssub.s32 %s16, 2
      // Predicated region
      $region65: #{side_se_conv2d.4} parent=63 // pred_check
        %p886 = pneg %p223
      $region66: #{side_se_conv2d.4} parent=63 // pred_check_branch
        %888 = sbr.rel (%p886) target = $region68
      $region67: #{side_se_conv2d.4} parent=63 // pred_region
        %p889 = scmp.lt.s32.totalorder %s22, 1
        %s890 = scalar_select %p889, %s22, 1
        %s891 = smul.addr %s890, 4
        %s892 = smul.addr %s891, 4
        %s893 = scalar_lea.vmem %s8, %s892
      $region68: #{side_se_conv2d.4} parent=63 // pred_fallthru
        _
      // Predicated region
      $region69: #{side_se_conv2d.4} parent=63 // pred_check
        %p894 = pneg %p249
      $region70: #{side_se_conv2d.4} parent=63 // pred_check_branch
        %896 = sbr.rel (%p894) target = $region72
      $region71: #{side_se_conv2d.4} parent=63 // pred_region
        %p897 = scmp.lt.s32.totalorder %s22, 1
        %s898 = scalar_select %p897, %s22, 1
        %s899 = smul.addr %s898, 4
        %s900 = smul.addr %s899, 8
        %s901 = scalar_lea.vmem %s9, %s900
      $region72: #{side_se_conv2d.4} parent=63 // pred_fallthru
        _
    $region64: #{side_se_conv2d.4} parent=5 // pred_fallthru
      _
  $region6: #{side_se_conv2d.4} parent=0 // loop_footer
    %s20 = sadd.s32 1, %s16
  $region7: #{side_se_conv2d.4} parent=0 // loop_footer_branch
    %15 = sbr.rel target = $region3
  $region8: #{side_se_conv2d.4} parent=0 // loop_exit
    _

</llo_original>
